<compile_context>
chip_gen: v7x
topology: tpu7x:2x2x1
jax: 0.10.0
libtpu: 0.0.40
codegen_flags: <defaults>
</compile_context>

<pallas_src>
import functools
import numpy as np
import jax
import jax.numpy as jnp
from jax.experimental import pallas as pl
from jax.experimental.pallas import tpu as pltpu


# ------------------------------ Pallas kernel -------------------------------

def _block_kernel(T, D, H, hd, eps,
                  x_ref, s1_ref, wqkv_ref, bqkv_ref, wo_ref, bo_ref,
                  cos_ref, sp_ref, sm_ref, bias_ref,
                  s2_ref, w1_ref, b1_ref, w2_ref, b2_ref,
                  o_ref,
                  qh_ref, kh_ref, vh_ref):
    x = x_ref[0]                                             # (T, D) f32

    # --- RMSNorm 1 (matches torch: x * scale / (||x||_2 + eps)) ---
    n1 = jnp.sqrt(jnp.sum(x * x, axis=-1, keepdims=True))    # (T, 1)
    inv1 = pl.reciprocal(n1 + eps, approx=True)              # EUP slot (approx documented)
    h = (x * inv1 * s1_ref[...]).astype(jnp.bfloat16)        # (T, D) bf16

    # --- fused QKV projection: one (T,D)x(D,3D) MXU pass, f32 accumulation ---
    qkv = jnp.dot(h, wqkv_ref[...], preferred_element_type=jnp.float32) + bqkv_ref[...]
    q, k, v = qkv[:, :D], qkv[:, D:2 * D], qkv[:, 2 * D:]

    # --- partial interleaved RoPE, fully elementwise ---
    # Full-width (T, D) tables come from the host (cos==1 / sin==0 outside the rope
    # dims, so roll wrap-around across head boundaries is multiplied by exactly 0).
    # TODO(synk): switch jnp.roll -> pltpu.roll (XLU lane-rotate) once D is a
    # 128-lane multiple; toy D=32 is below one lane tile.
    cos_t, sp_t, sm_t = cos_ref[...], sp_ref[...], sm_ref[...]

    def rope(z):
        z_prev = jnp.roll(z, 1, axis=-1)                     # z[j-1]
        z_next = jnp.roll(z, -1, axis=-1)                    # z[j+1]
        return z * cos_t + z_prev * sp_t + z_next * sm_t

    scale = 1.0 / float(hd) ** 0.5
    rq = rope(q) * scale
    rk = rope(k)

    # Stage per-head operands into head-major bf16 scratches (static slices only;
    # lane-dense at production hd=128).
    for hh in range(H):
        sl = slice(hh * hd, (hh + 1) * hd)
        qh_ref[hh] = rq[:, sl].astype(jnp.bfloat16)
        kh_ref[hh] = rk[:, sl].astype(jnp.bfloat16)
        vh_ref[hh] = v[:, sl].astype(jnp.bfloat16)

    bias = bias_ref[...]                                     # (T, T) f32, 0 / -1e30

    # --- per-head causal softmax attention with folded output projection ---
    def head_body(hh, acc):
        qh = qh_ref[hh]                                      # (T, hd) bf16
        # transposed-RHS dim numbers -> MXU-native, no XLU transpose per head
        s = jax.lax.dot_general(qh, kh_ref[hh], (((1,), (1,)), ((), ())),
                                preferred_element_type=jnp.float32) + bias
        m = jnp.max(s, axis=-1, keepdims=True)
        e = jnp.exp(s - m)                                   # f32 (v5e has no bf16 EUP)
        p = e * pl.reciprocal(jnp.sum(e, axis=-1, keepdims=True), approx=True)
        oh = jnp.dot(p.astype(jnp.bfloat16), vh_ref[hh],
                     preferred_element_type=jnp.float32)     # (T, hd)
        # fold output projection: attn @ wo == sum_h oh @ wo[h]
        return acc + jnp.dot(oh.astype(jnp.bfloat16), wo_ref[hh],
                             preferred_element_type=jnp.float32)

    attn = jax.lax.fori_loop(0, H, head_body, jnp.zeros((T, D), jnp.float32))
    x = x + attn + bo_ref[...]                               # residual 1 (f32)

    # --- RMSNorm 2 + SiLU MLP ---
    n2 = jnp.sqrt(jnp.sum(x * x, axis=-1, keepdims=True))
    inv2 = pl.reciprocal(n2 + eps, approx=True)
    h2 = (x * inv2 * s2_ref[...]).astype(jnp.bfloat16)
    f = jnp.dot(h2, w1_ref[...], preferred_element_type=jnp.float32) + b1_ref[...]
    f = f * jax.nn.sigmoid(f)                                # SiLU in f32
    f = jnp.dot(f.astype(jnp.bfloat16), w2_ref[...],
                preferred_element_type=jnp.float32) + b2_ref[...]

    o_ref[0] = x + f                                         # residual 2


# ------------------------------ host-side glue -------------------------------

@functools.lru_cache(maxsize=None)
def _rope_tables(T, H, hd, rope_dim, base):
    """Full-width (T, H*hd) tables: cos, +sin (odd rope lanes), -sin (even rope lanes)."""
    cos_hd = np.ones((T, hd), np.float32)
    sp_hd = np.zeros((T, hd), np.float32)
    sm_hd = np.zeros((T, hd), np.float32)
    if rope_dim > 0:
        inv_freq = 1.0 / (base ** (np.arange(0, rope_dim, 2, dtype=np.float32) / rope_dim))
        freqs = np.arange(T, dtype=np.float32)[:, None] * inv_freq[None, :]   # (T, half)
        c, s = np.cos(freqs), np.sin(freqs)
        cos_hd[:, 0:rope_dim:2] = c
        cos_hd[:, 1:rope_dim:2] = c
        sp_hd[:, 1:rope_dim:2] = s       # feeds z[j-1] at odd lanes
        sm_hd[:, 0:rope_dim:2] = -s      # feeds z[j+1] at even lanes
    tile = lambda a: jnp.asarray(np.tile(a, (1, H)))
    return tile(cos_hd), tile(sp_hd), tile(sm_hd)


@functools.lru_cache(maxsize=None)
def _causal_bias(T):
    return jnp.asarray(np.triu(np.full((T, T), -1e30, np.float32), k=1))


def _vmem_limit_bytes():
    cap = 128 * 1024 * 1024
    try:
        cap = int(getattr(pltpu.get_tpu_info(), "vmem_capacity_bytes", cap))
    except Exception:
        pass
    # ~15% headroom for compiler scratch / pipeline buffers:
    #   v7x (64 MiB)  -> ~54 MiB;  v5e/v6e (128 MiB) -> ~109 MiB (capped at 112 MiB).
    return min(int(cap * 0.85), 112 * 1024 * 1024)


def prepare_params(params, *, num_heads):
    """One-time prep: fuse QKV, reshape wo head-major, cast weights to bf16 (cached
    by the caller -- do NOT call per step)."""
    D = params["wq"].shape[0]
    hd = D // num_heads
    bf = lambda a: a.astype(jnp.bfloat16)
    wqkv = jnp.concatenate([params["wq"], params["wk"], params["wv"]], axis=1)
    bqkv = jnp.concatenate([params["bq"], params["bk"], params["bv"]], axis=1)
    return dict(
        s1=params["s1"], s2=params["s2"],
        wqkv=bf(wqkv), bqkv=bqkv,
        wo=bf(params["wo"]).reshape(num_heads, hd, D), bo=params["bo"],
        w1=bf(params["w1"]), b1=params["b1"],
        w2=bf(params["w2"]), b2=params["b2"],
    )


def transformer_block(x, p, *, num_heads, rotary_pct, rotary_base, eps):
    """x: (B, T, D) f32; p: output of prepare_params."""
    B, T, D = x.shape
    H = num_heads
    assert D % H == 0
    hd = D // H
    rope_dim = int(hd * rotary_pct)
    assert rope_dim % 2 == 0, "interleaved RoPE requires an even rotary dimension"
    F = p["w1"].shape[1]

    cos_t, sp_t, sm_t = _rope_tables(T, H, hd, rope_dim, float(rotary_base))
    bias = _causal_bias(T)

    inputs = [
        x, p["s1"], p["wqkv"], p["bqkv"], p["wo"], p["bo"],
        cos_t, sp_t, sm_t, bias,
        p["s2"], p["w1"], p["b1"], p["w2"], p["b2"],
    ]

    def resident(shape):
        # Grid-invariant block: constant index_map, so the copy is skipped after the
        # first grid step.  TODO(synk): at production sizes pass
        # pipeline_mode=pl.Buffered(1) to also drop the redundant second buffer.
        nd = len(shape)
        return pl.BlockSpec(shape, lambda b, _nd=nd: (0,) * _nd)

    in_specs = [pl.BlockSpec((1, T, D), lambda b: (b, 0, 0))]
    in_specs += [resident(a.shape) for a in inputs[1:]]

    kernel = functools.partial(_block_kernel, T, D, H, hd, eps)

    flops = int(B * (8 * T * D * D + 4 * T * T * D + 4 * T * D * F))
    transcendentals = int(B * (H * T * T + T * F + 2 * T))
    bytes_accessed = int(
        2 * B * T * D * 4                      # x in + out (f32)
        + (4 * D * D + 2 * D * F) * 2          # bf16 weights (fused qkv + wo + w1 + w2)
        + (6 * D + F) * 4                      # biases + norm scales
        + (3 * T * D + T * T) * 4)             # rope tables + causal bias

    grid_spec = pltpu.PrefetchScalarGridSpec(
        num_scalar_prefetch=0,
        grid=(B,),
        in_specs=in_specs,
        out_specs=pl.BlockSpec((1, T, D), lambda b: (b, 0, 0)),
        scratch_shapes=[
            pltpu.VMEM((H, T, hd), jnp.bfloat16),   # q (roped, pre-scaled)
            pltpu.VMEM((H, T, hd), jnp.bfloat16),   # k (roped)
            pltpu.VMEM((H, T, hd), jnp.bfloat16),   # v
        ],
    )

    return pl.pallas_call(
        kernel,
        grid_spec=grid_spec,
        out_shape=jax.ShapeDtypeStruct((B, T, D), jnp.float32),
        compiler_params=pltpu.CompilerParams(
            # batch axis is "parallel" -> sharded across both TensorCores on v7x
            dimension_semantics=("parallel",),
            vmem_limit_bytes=_vmem_limit_bytes(),
        ),
        cost_estimate=pl.CostEstimate(
            flops=flops, transcendentals=transcendentals,
            bytes_accessed=bytes_accessed),
    )(*inputs)


# --------------------------- pure-JAX reference ------------------------------
# Mirrors the PyTorch module's math (and the kernel's bf16-operand / f32-accumulate
# matmul precision) independently of the kernel's table/roll formulation.

def _reference(x, p, *, num_heads, rotary_pct, rotary_base, eps):
    B, T, D = x.shape
    H = num_heads
    hd = D // H
    rope_dim = int(hd * rotary_pct)

    def norm(z, s):
        n = jnp.sqrt(jnp.sum(z * z, axis=-1, keepdims=True))
        return z * (s / (n + eps))

    def mm(a, w):
        return jnp.dot(a.astype(jnp.bfloat16), w.astype(jnp.bfloat16),
                       preferred_element_type=jnp.float32)

    def rope(xh):                                            # (B, H, T, hd)
        if rope_dim == 0:
            return xh
        xf, xl = xh[..., :rope_dim], xh[..., rope_dim:]
        inv_freq = 1.0 / (rotary_base ** (
            jnp.arange(0, rope_dim, 2, dtype=jnp.float32) / rope_dim))
        t = jnp.arange(T, dtype=jnp.float32)
        freqs = t[:, None] * inv_freq[None, :]               # (T, half)
        cos, sin = jnp.cos(freqs), jnp.sin(freqs)
        xe, xo = xf[..., 0::2], xf[..., 1::2]
        re = xe * cos - xo * sin
        ro = xe * sin + xo * cos
        rot = jnp.stack([re, ro], axis=-1).reshape(xf.shape)
        return jnp.concatenate([rot, xl], axis=-1)

    h = norm(x, p["s1"])
    q = mm(h, p["wq"]) + p["bq"]
    k = mm(h, p["wk"]) + p["bk"]
    v = mm(h, p["wv"]) + p["bv"]
    qh = q.reshape(B, T, H, hd).transpose(0, 2, 1, 3)
    kh = k.reshape(B, T, H, hd).transpose(0, 2, 1, 3)
    vh = v.reshape(B, T, H, hd).transpose(0, 2, 1, 3)
    qh, kh = rope(qh), rope(kh)
    s = jnp.einsum('bhqd,bhkd->bhqk', qh.astype(jnp.bfloat16), kh.astype(jnp.bfloat16),
                   preferred_element_type=jnp.float32) / jnp.sqrt(float(hd))
    mask = jnp.tril(jnp.ones((T, T)))
    s = jnp.where(mask == 0, -jnp.inf, s)
    a = jax.nn.softmax(s, axis=-1)
    o = jnp.einsum('bhqk,bhkd->bhqd', a.astype(jnp.bfloat16), vh.astype(jnp.bfloat16),
                   preferred_element_type=jnp.float32)
    o = o.transpose(0, 2, 1, 3).reshape(B, T, D)
    x = x + mm(o, p["wo"]) + p["bo"]
    h2 = norm(x, p["s2"])
    f = mm(h2, p["w1"]) + p["b1"]
    f = f * jax.nn.sigmoid(f)
    f = mm(f, p["w2"]) + p["b2"]
    return x + f


# ---------------------------------- main --------------------------------------

if __name__ == "__main__":
    config = dict(hidden_size=32, num_attention_heads=4, rotary_pct=0.5,
                  rotary_base=10000, rms_norm_eps=1e-6, intermediate_size=64)
    B, T = 2, 8
    D, Ff = config["hidden_size"], config["intermediate_size"]
    H = config["num_attention_heads"]

    key = jax.random.PRNGKey(0)
    keys = jax.random.split(key, 16)

    def lin(kw, kb, fan_in, fan_out):
        bound = 1.0 / np.sqrt(fan_in)
        w = jax.random.uniform(kw, (fan_in, fan_out), jnp.float32, -bound, bound)
        b = jax.random.uniform(kb, (1, fan_out), jnp.float32, -bound, bound)
        return w, b

    wq, bq = lin(keys[0], keys[1], D, D)
    wk, bk = lin(keys[2], keys[3], D, D)
    wv, bv = lin(keys[4], keys[5], D, D)
    wo, bo = lin(keys[6], keys[7], D, D)
    w1, b1 = lin(keys[8], keys[9], D, Ff)
    w2, b2 = lin(keys[10], keys[11], Ff, D)
    params = dict(
        s1=jnp.ones((1, D), jnp.float32), s2=jnp.ones((1, D), jnp.float32),
        wq=wq, bq=bq, wk=wk, bk=bk, wv=wv, bv=bv, wo=wo, bo=bo,
        w1=w1, b1=b1, w2=w2, b2=b2,
    )

    x = jax.random.normal(keys[12], (B, T, D), jnp.float32)

    prepared = prepare_params(params, num_heads=H)           # one-time bf16/fused copy

    out = transformer_block(
        x, prepared,
        num_heads=H,
        rotary_pct=config["rotary_pct"],
        rotary_base=config["rotary_base"],
        eps=config["rms_norm_eps"],
    )
    out = jax.block_until_ready(out)

    ref = _reference(
        x, params,
        num_heads=H,
        rotary_pct=config["rotary_pct"],
        rotary_base=config["rotary_base"],
        eps=config["rms_norm_eps"],
    )
    np.testing.assert_allclose(np.asarray(out), np.asarray(ref), rtol=3e-2, atol=3e-2)

    print("KERNEL_OK")
</pallas_src>

<mosaic_0001>
module attributes {stable_mosaic.version = 11 : i64} {
  func.func @_block_kernel(%arg0: i32, %arg1: memref<1x8x32xf32, #tpu.memory_space<vmem>>, %arg2: memref<1x32xf32, #tpu.memory_space<vmem>>, %arg3: memref<32x96xbf16, #tpu.memory_space<vmem>>, %arg4: memref<1x96xf32, #tpu.memory_space<vmem>>, %arg5: memref<4x8x32xbf16, #tpu.memory_space<vmem>>, %arg6: memref<1x32xf32, #tpu.memory_space<vmem>>, %arg7: memref<8x32xf32, #tpu.memory_space<vmem>>, %arg8: memref<8x32xf32, #tpu.memory_space<vmem>>, %arg9: memref<8x32xf32, #tpu.memory_space<vmem>>, %arg10: memref<8x8xf32, #tpu.memory_space<vmem>>, %arg11: memref<1x32xf32, #tpu.memory_space<vmem>>, %arg12: memref<32x64xbf16, #tpu.memory_space<vmem>>, %arg13: memref<1x64xf32, #tpu.memory_space<vmem>>, %arg14: memref<64x32xbf16, #tpu.memory_space<vmem>>, %arg15: memref<1x32xf32, #tpu.memory_space<vmem>>, %arg16: memref<1x8x32xf32, #tpu.memory_space<vmem>>, %arg17: memref<4x8x8xbf16, #tpu.memory_space<vmem>>, %arg18: memref<4x8x8xbf16, #tpu.memory_space<vmem>>, %arg19: memref<4x8x8xbf16, #tpu.memory_space<vmem>>) attributes {dimension_semantics = [#tpu.dimension_semantics<parallel>], iteration_bounds = array<i64: 2>, scalar_prefetch = 0 : i64, scratch_operands = 3 : i64, tpu.core_type = #tpu.core_type<tc>, window_params = [{transform_indices = @transform_0, window_bounds = array<i64: 1, 8, 32>}, {pipeline_mode = #tpu.pipeline_mode<synchronous>, transform_indices = @transform_1, window_bounds = array<i64: 1, 32>}, {pipeline_mode = #tpu.pipeline_mode<synchronous>, transform_indices = @transform_2, window_bounds = array<i64: 32, 96>}, {pipeline_mode = #tpu.pipeline_mode<synchronous>, transform_indices = @transform_3, window_bounds = array<i64: 1, 96>}, {pipeline_mode = #tpu.pipeline_mode<synchronous>, transform_indices = @transform_4, window_bounds = array<i64: 4, 8, 32>}, {pipeline_mode = #tpu.pipeline_mode<synchronous>, transform_indices = @transform_5, window_bounds = array<i64: 1, 32>}, {pipeline_mode = #tpu.pipeline_mode<synchronous>, transform_indices = @transform_6, window_bounds = array<i64: 8, 32>}, {pipeline_mode = #tpu.pipeline_mode<synchronous>, transform_indices = @transform_7, window_bounds = array<i64: 8, 32>}, {pipeline_mode = #tpu.pipeline_mode<synchronous>, transform_indices = @transform_8, window_bounds = array<i64: 8, 32>}, {pipeline_mode = #tpu.pipeline_mode<synchronous>, transform_indices = @transform_9, window_bounds = array<i64: 8, 8>}, {pipeline_mode = #tpu.pipeline_mode<synchronous>, transform_indices = @transform_10, window_bounds = array<i64: 1, 32>}, {pipeline_mode = #tpu.pipeline_mode<synchronous>, transform_indices = @transform_11, window_bounds = array<i64: 32, 64>}, {pipeline_mode = #tpu.pipeline_mode<synchronous>, transform_indices = @transform_12, window_bounds = array<i64: 1, 64>}, {pipeline_mode = #tpu.pipeline_mode<synchronous>, transform_indices = @transform_13, window_bounds = array<i64: 64, 32>}, {pipeline_mode = #tpu.pipeline_mode<synchronous>, transform_indices = @transform_14, window_bounds = array<i64: 1, 32>}, {transform_indices = @transform_15, window_bounds = array<i64: 1, 8, 32>}]} {
    %c0 = arith.constant 0 : index
    %c0_0 = arith.constant 0 : index
    %c0_1 = arith.constant 0 : index
    %0 = vector.load %arg1[%c0, %c0_0, %c0_1] : memref<1x8x32xf32, #tpu.memory_space<vmem>>, vector<1x8x32xf32>
    %1 = vector.shape_cast %0 : vector<1x8x32xf32> to vector<8x32xf32>
    %2 = arith.mulf %1, %1 : vector<8x32xf32>
    %cst = arith.constant dense<0.000000e+00> : vector<8xf32>
    %3 = vector.multi_reduction <add>, %2, %cst [1] : vector<8x32xf32> to vector<8xf32>
    %4 = vector.shape_cast %3 : vector<8xf32> to vector<8x1xf32>
    %5 = math.sqrt %4 : vector<8x1xf32>
    %cst_2 = arith.constant 9.99999997E-7 : f32
    %6 = vector.broadcast %cst_2 : f32 to vector<8x1xf32>
    %7 = arith.addf %5, %6 : vector<8x1xf32>
    %8 = tpu.reciprocal %7 {approx = true} : vector<8x1xf32> -> vector<8x1xf32>
    %9 = vector.broadcast %8 : vector<8x1xf32> to vector<8x32xf32>
    %10 = arith.mulf %1, %9 : vector<8x32xf32>
    %c0_3 = arith.constant 0 : index
    %c0_4 = arith.constant 0 : index
    %11 = vector.load %arg2[%c0_3, %c0_4] : memref<1x32xf32, #tpu.memory_space<vmem>>, vector<1x32xf32>
    %12 = vector.broadcast %11 : vector<1x32xf32> to vector<8x32xf32>
    %13 = arith.mulf %10, %12 : vector<8x32xf32>
    %14 = arith.truncf %13 : vector<8x32xf32> to vector<8x32xbf16>
    %c0_5 = arith.constant 0 : index
    %c0_6 = arith.constant 0 : index
    %15 = vector.load %arg3[%c0_5, %c0_6] : memref<32x96xbf16, #tpu.memory_space<vmem>>, vector<32x96xbf16>
    %cst_7 = arith.constant dense<0.000000e+00> : vector<8x96xf32>
    %16 = tpu.matmul %14, %15, %cst_7 {dimension_numbers = #tpu.dot_dimension_numbers<[1], [0], [0], [1], [0, 0, 1, 1], [], []>} : vector<8x32xbf16>, vector<32x96xbf16>, vector<8x96xf32> -> vector<8x96xf32>
    %c0_8 = arith.constant 0 : index
    %c0_9 = arith.constant 0 : index
    %17 = vector.load %arg4[%c0_8, %c0_9] : memref<1x96xf32, #tpu.memory_space<vmem>>, vector<1x96xf32>
    %18 = vector.broadcast %17 : vector<1x96xf32> to vector<8x96xf32>
    %19 = arith.addf %16, %18 : vector<8x96xf32>
    %20 = vector.extract_strided_slice %19 {offsets = [0, 0], sizes = [8, 32], strides = [1, 1]} : vector<8x96xf32> to vector<8x32xf32>
    %21 = vector.extract_strided_slice %19 {offsets = [0, 32], sizes = [8, 32], strides = [1, 1]} : vector<8x96xf32> to vector<8x32xf32>
    %22 = vector.extract_strided_slice %19 {offsets = [0, 64], sizes = [8, 32], strides = [1, 1]} : vector<8x96xf32> to vector<8x32xf32>
    %c0_10 = arith.constant 0 : index
    %c0_11 = arith.constant 0 : index
    %23 = vector.load %arg7[%c0_10, %c0_11] : memref<8x32xf32, #tpu.memory_space<vmem>>, vector<8x32xf32>
    %c0_12 = arith.constant 0 : index
    %c0_13 = arith.constant 0 : index
    %24 = vector.load %arg8[%c0_12, %c0_13] : memref<8x32xf32, #tpu.memory_space<vmem>>, vector<8x32xf32>
    %c0_14 = arith.constant 0 : index
    %c0_15 = arith.constant 0 : index
    %25 = vector.load %arg9[%c0_14, %c0_15] : memref<8x32xf32, #tpu.memory_space<vmem>>, vector<8x32xf32>
    %26 = vector.extract_strided_slice %20 {offsets = [0, 31], sizes = [8, 1], strides = [1, 1]} : vector<8x32xf32> to vector<8x1xf32>
    %27 = vector.extract_strided_slice %20 {offsets = [0, 0], sizes = [8, 31], strides = [1, 1]} : vector<8x32xf32> to vector<8x31xf32>
    %28 = tpu.concatenate %26, %27 in 1 : vector<8x1xf32>, vector<8x31xf32> -> vector<8x32xf32>
    %29 = vector.extract_strided_slice %20 {offsets = [0, 1], sizes = [8, 31], strides = [1, 1]} : vector<8x32xf32> to vector<8x31xf32>
    %30 = vector.extract_strided_slice %20 {offsets = [0, 0], sizes = [8, 1], strides = [1, 1]} : vector<8x32xf32> to vector<8x1xf32>
    %31 = tpu.concatenate %29, %30 in 1 : vector<8x31xf32>, vector<8x1xf32> -> vector<8x32xf32>
    %32 = arith.mulf %20, %23 : vector<8x32xf32>
    %33 = arith.mulf %28, %24 : vector<8x32xf32>
    %34 = arith.addf %32, %33 : vector<8x32xf32>
    %35 = arith.mulf %31, %25 : vector<8x32xf32>
    %36 = arith.addf %34, %35 : vector<8x32xf32>
    %cst_16 = arith.constant 0.353553385 : f32
    %37 = vector.broadcast %cst_16 : f32 to vector<8x32xf32>
    %38 = arith.mulf %36, %37 : vector<8x32xf32>
    %39 = vector.extract_strided_slice %21 {offsets = [0, 31], sizes = [8, 1], strides = [1, 1]} : vector<8x32xf32> to vector<8x1xf32>
    %40 = vector.extract_strided_slice %21 {offsets = [0, 0], sizes = [8, 31], strides = [1, 1]} : vector<8x32xf32> to vector<8x31xf32>
    %41 = tpu.concatenate %39, %40 in 1 : vector<8x1xf32>, vector<8x31xf32> -> vector<8x32xf32>
    %42 = vector.extract_strided_slice %21 {offsets = [0, 1], sizes = [8, 31], strides = [1, 1]} : vector<8x32xf32> to vector<8x31xf32>
    %43 = vector.extract_strided_slice %21 {offsets = [0, 0], sizes = [8, 1], strides = [1, 1]} : vector<8x32xf32> to vector<8x1xf32>
    %44 = tpu.concatenate %42, %43 in 1 : vector<8x31xf32>, vector<8x1xf32> -> vector<8x32xf32>
    %45 = arith.mulf %21, %23 : vector<8x32xf32>
    %46 = arith.mulf %41, %24 : vector<8x32xf32>
    %47 = arith.addf %45, %46 : vector<8x32xf32>
    %48 = arith.mulf %44, %25 : vector<8x32xf32>
    %49 = arith.addf %47, %48 : vector<8x32xf32>
    %50 = vector.extract_strided_slice %38 {offsets = [0, 0], sizes = [8, 8], strides = [1, 1]} : vector<8x32xf32> to vector<8x8xf32>
    %51 = arith.truncf %50 : vector<8x8xf32> to vector<8x8xbf16>
    %c0_17 = arith.constant 0 : index
    %c0_18 = arith.constant 0 : index
    %c0_19 = arith.constant 0 : index
    %52 = vector.load %arg17[%c0_17, %c0_18, %c0_19] : memref<4x8x8xbf16, #tpu.memory_space<vmem>>, vector<1x8x8xbf16>
    %53 = vector.shape_cast %52 : vector<1x8x8xbf16> to vector<8x8xbf16>
    %54 = vector.shape_cast %51 : vector<8x8xbf16> to vector<1x8x8xbf16>
    tpu.vector_store %arg17[%c0_17, %c0_18, %c0_19], %54 {strides = array<i32>} : memref<4x8x8xbf16, #tpu.memory_space<vmem>>, vector<1x8x8xbf16>,
    %55 = vector.extract_strided_slice %49 {offsets = [0, 0], sizes = [8, 8], strides = [1, 1]} : vector<8x32xf32> to vector<8x8xf32>
    %56 = arith.truncf %55 : vector<8x8xf32> to vector<8x8xbf16>
    %c0_20 = arith.constant 0 : index
    %c0_21 = arith.constant 0 : index
    %c0_22 = arith.constant 0 : index
    %57 = vector.load %arg18[%c0_20, %c0_21, %c0_22] : memref<4x8x8xbf16, #tpu.memory_space<vmem>>, vector<1x8x8xbf16>
    %58 = vector.shape_cast %57 : vector<1x8x8xbf16> to vector<8x8xbf16>
    %59 = vector.shape_cast %56 : vector<8x8xbf16> to vector<1x8x8xbf16>
    tpu.vector_store %arg18[%c0_20, %c0_21, %c0_22], %59 {strides = array<i32>} : memref<4x8x8xbf16, #tpu.memory_space<vmem>>, vector<1x8x8xbf16>,
    %60 = vector.extract_strided_slice %22 {offsets = [0, 0], sizes = [8, 8], strides = [1, 1]} : vector<8x32xf32> to vector<8x8xf32>
    %61 = arith.truncf %60 : vector<8x8xf32> to vector<8x8xbf16>
    %c0_23 = arith.constant 0 : index
    %c0_24 = arith.constant 0 : index
    %c0_25 = arith.constant 0 : index
    %62 = vector.load %arg19[%c0_23, %c0_24, %c0_25] : memref<4x8x8xbf16, #tpu.memory_space<vmem>>, vector<1x8x8xbf16>
    %63 = vector.shape_cast %62 : vector<1x8x8xbf16> to vector<8x8xbf16>
    %64 = vector.shape_cast %61 : vector<8x8xbf16> to vector<1x8x8xbf16>
    tpu.vector_store %arg19[%c0_23, %c0_24, %c0_25], %64 {strides = array<i32>} : memref<4x8x8xbf16, #tpu.memory_space<vmem>>, vector<1x8x8xbf16>,
    %65 = vector.extract_strided_slice %38 {offsets = [0, 8], sizes = [8, 8], strides = [1, 1]} : vector<8x32xf32> to vector<8x8xf32>
    %66 = arith.truncf %65 : vector<8x8xf32> to vector<8x8xbf16>
    %c1 = arith.constant 1 : index
    %c0_26 = arith.constant 0 : index
    %c0_27 = arith.constant 0 : index
    %67 = vector.load %arg17[%c1, %c0_26, %c0_27] : memref<4x8x8xbf16, #tpu.memory_space<vmem>>, vector<1x8x8xbf16>
    %68 = vector.shape_cast %67 : vector<1x8x8xbf16> to vector<8x8xbf16>
    %69 = vector.shape_cast %66 : vector<8x8xbf16> to vector<1x8x8xbf16>
    tpu.vector_store %arg17[%c1, %c0_26, %c0_27], %69 {strides = array<i32>} : memref<4x8x8xbf16, #tpu.memory_space<vmem>>, vector<1x8x8xbf16>,
    %70 = vector.extract_strided_slice %49 {offsets = [0, 8], sizes = [8, 8], strides = [1, 1]} : vector<8x32xf32> to vector<8x8xf32>
    %71 = arith.truncf %70 : vector<8x8xf32> to vector<8x8xbf16>
    %c1_28 = arith.constant 1 : index
    %c0_29 = arith.constant 0 : index
    %c0_30 = arith.constant 0 : index
    %72 = vector.load %arg18[%c1_28, %c0_29, %c0_30] : memref<4x8x8xbf16, #tpu.memory_space<vmem>>, vector<1x8x8xbf16>
    %73 = vector.shape_cast %72 : vector<1x8x8xbf16> to vector<8x8xbf16>
    %74 = vector.shape_cast %71 : vector<8x8xbf16> to vector<1x8x8xbf16>
    tpu.vector_store %arg18[%c1_28, %c0_29, %c0_30], %74 {strides = array<i32>} : memref<4x8x8xbf16, #tpu.memory_space<vmem>>, vector<1x8x8xbf16>,
    %75 = vector.extract_strided_slice %22 {offsets = [0, 8], sizes = [8, 8], strides = [1, 1]} : vector<8x32xf32> to vector<8x8xf32>
    %76 = arith.truncf %75 : vector<8x8xf32> to vector<8x8xbf16>
    %c1_31 = arith.constant 1 : index
    %c0_32 = arith.constant 0 : index
    %c0_33 = arith.constant 0 : index
    %77 = vector.load %arg19[%c1_31, %c0_32, %c0_33] : memref<4x8x8xbf16, #tpu.memory_space<vmem>>, vector<1x8x8xbf16>
    %78 = vector.shape_cast %77 : vector<1x8x8xbf16> to vector<8x8xbf16>
    %79 = vector.shape_cast %76 : vector<8x8xbf16> to vector<1x8x8xbf16>
    tpu.vector_store %arg19[%c1_31, %c0_32, %c0_33], %79 {strides = array<i32>} : memref<4x8x8xbf16, #tpu.memory_space<vmem>>, vector<1x8x8xbf16>,
    %80 = vector.extract_strided_slice %38 {offsets = [0, 16], sizes = [8, 8], strides = [1, 1]} : vector<8x32xf32> to vector<8x8xf32>
    %81 = arith.truncf %80 : vector<8x8xf32> to vector<8x8xbf16>
    %c2 = arith.constant 2 : index
    %c0_34 = arith.constant 0 : index
    %c0_35 = arith.constant 0 : index
    %82 = vector.load %arg17[%c2, %c0_34, %c0_35] : memref<4x8x8xbf16, #tpu.memory_space<vmem>>, vector<1x8x8xbf16>
    %83 = vector.shape_cast %82 : vector<1x8x8xbf16> to vector<8x8xbf16>
    %84 = vector.shape_cast %81 : vector<8x8xbf16> to vector<1x8x8xbf16>
    tpu.vector_store %arg17[%c2, %c0_34, %c0_35], %84 {strides = array<i32>} : memref<4x8x8xbf16, #tpu.memory_space<vmem>>, vector<1x8x8xbf16>,
    %85 = vector.extract_strided_slice %49 {offsets = [0, 16], sizes = [8, 8], strides = [1, 1]} : vector<8x32xf32> to vector<8x8xf32>
    %86 = arith.truncf %85 : vector<8x8xf32> to vector<8x8xbf16>
    %c2_36 = arith.constant 2 : index
    %c0_37 = arith.constant 0 : index
    %c0_38 = arith.constant 0 : index
    %87 = vector.load %arg18[%c2_36, %c0_37, %c0_38] : memref<4x8x8xbf16, #tpu.memory_space<vmem>>, vector<1x8x8xbf16>
    %88 = vector.shape_cast %87 : vector<1x8x8xbf16> to vector<8x8xbf16>
    %89 = vector.shape_cast %86 : vector<8x8xbf16> to vector<1x8x8xbf16>
    tpu.vector_store %arg18[%c2_36, %c0_37, %c0_38], %89 {strides = array<i32>} : memref<4x8x8xbf16, #tpu.memory_space<vmem>>, vector<1x8x8xbf16>,
    %90 = vector.extract_strided_slice %22 {offsets = [0, 16], sizes = [8, 8], strides = [1, 1]} : vector<8x32xf32> to vector<8x8xf32>
    %91 = arith.truncf %90 : vector<8x8xf32> to vector<8x8xbf16>
    %c2_39 = arith.constant 2 : index
    %c0_40 = arith.constant 0 : index
    %c0_41 = arith.constant 0 : index
    %92 = vector.load %arg19[%c2_39, %c0_40, %c0_41] : memref<4x8x8xbf16, #tpu.memory_space<vmem>>, vector<1x8x8xbf16>
    %93 = vector.shape_cast %92 : vector<1x8x8xbf16> to vector<8x8xbf16>
    %94 = vector.shape_cast %91 : vector<8x8xbf16> to vector<1x8x8xbf16>
    tpu.vector_store %arg19[%c2_39, %c0_40, %c0_41], %94 {strides = array<i32>} : memref<4x8x8xbf16, #tpu.memory_space<vmem>>, vector<1x8x8xbf16>,
    %95 = vector.extract_strided_slice %38 {offsets = [0, 24], sizes = [8, 8], strides = [1, 1]} : vector<8x32xf32> to vector<8x8xf32>
    %96 = arith.truncf %95 : vector<8x8xf32> to vector<8x8xbf16>
    %c3 = arith.constant 3 : index
    %c0_42 = arith.constant 0 : index
    %c0_43 = arith.constant 0 : index
    %97 = vector.load %arg17[%c3, %c0_42, %c0_43] : memref<4x8x8xbf16, #tpu.memory_space<vmem>>, vector<1x8x8xbf16>
    %98 = vector.shape_cast %97 : vector<1x8x8xbf16> to vector<8x8xbf16>
    %99 = vector.shape_cast %96 : vector<8x8xbf16> to vector<1x8x8xbf16>
    tpu.vector_store %arg17[%c3, %c0_42, %c0_43], %99 {strides = array<i32>} : memref<4x8x8xbf16, #tpu.memory_space<vmem>>, vector<1x8x8xbf16>,
    %100 = vector.extract_strided_slice %49 {offsets = [0, 24], sizes = [8, 8], strides = [1, 1]} : vector<8x32xf32> to vector<8x8xf32>
    %101 = arith.truncf %100 : vector<8x8xf32> to vector<8x8xbf16>
    %c3_44 = arith.constant 3 : index
    %c0_45 = arith.constant 0 : index
    %c0_46 = arith.constant 0 : index
    %102 = vector.load %arg18[%c3_44, %c0_45, %c0_46] : memref<4x8x8xbf16, #tpu.memory_space<vmem>>, vector<1x8x8xbf16>
    %103 = vector.shape_cast %102 : vector<1x8x8xbf16> to vector<8x8xbf16>
    %104 = vector.shape_cast %101 : vector<8x8xbf16> to vector<1x8x8xbf16>
    tpu.vector_store %arg18[%c3_44, %c0_45, %c0_46], %104 {strides = array<i32>} : memref<4x8x8xbf16, #tpu.memory_space<vmem>>, vector<1x8x8xbf16>,
    %105 = vector.extract_strided_slice %22 {offsets = [0, 24], sizes = [8, 8], strides = [1, 1]} : vector<8x32xf32> to vector<8x8xf32>
    %106 = arith.truncf %105 : vector<8x8xf32> to vector<8x8xbf16>
    %c3_47 = arith.constant 3 : index
    %c0_48 = arith.constant 0 : index
    %c0_49 = arith.constant 0 : index
    %107 = vector.load %arg19[%c3_47, %c0_48, %c0_49] : memref<4x8x8xbf16, #tpu.memory_space<vmem>>, vector<1x8x8xbf16>
    %108 = vector.shape_cast %107 : vector<1x8x8xbf16> to vector<8x8xbf16>
    %109 = vector.shape_cast %106 : vector<8x8xbf16> to vector<1x8x8xbf16>
    tpu.vector_store %arg19[%c3_47, %c0_48, %c0_49], %109 {strides = array<i32>} : memref<4x8x8xbf16, #tpu.memory_space<vmem>>, vector<1x8x8xbf16>,
    %c0_50 = arith.constant 0 : index
    %c0_51 = arith.constant 0 : index
    %110 = vector.load %arg10[%c0_50, %c0_51] : memref<8x8xf32, #tpu.memory_space<vmem>>, vector<8x8xf32>
    %cst_52 = arith.constant 0.000000e+00 : f32
    %111 = vector.broadcast %cst_52 : f32 to vector<8x32xf32>
    %c0_i32 = arith.constant 0 : i32
    %c4_i32 = arith.constant 4 : i32
    %112 = arith.addi %c0_i32, %c4_i32 : i32
    %c1_i32 = arith.constant 1 : i32
    %113 = scf.for %arg20 = %c0_i32 to %112 step %c1_i32 iter_args(%arg21 = %111) -> (vector<8x32xf32>)  : i32 {
      %152 = arith.index_cast %arg20 : i32 to index
      %c0_74 = arith.constant 0 : index
      %c0_75 = arith.constant 0 : index
      %153 = vector.load %arg17[%152, %c0_74, %c0_75] : memref<4x8x8xbf16, #tpu.memory_space<vmem>>, vector<1x8x8xbf16>
      %154 = vector.shape_cast %153 : vector<1x8x8xbf16> to vector<8x8xbf16>
      %155 = arith.index_cast %arg20 : i32 to index
      %c0_76 = arith.constant 0 : index
      %c0_77 = arith.constant 0 : index
      %156 = vector.load %arg18[%155, %c0_76, %c0_77] : memref<4x8x8xbf16, #tpu.memory_space<vmem>>, vector<1x8x8xbf16>
      %157 = vector.shape_cast %156 : vector<1x8x8xbf16> to vector<8x8xbf16>
      %cst_78 = arith.constant dense<0.000000e+00> : vector<8x8xf32>
      %158 = tpu.matmul %154, %157, %cst_78 {dimension_numbers = #tpu.dot_dimension_numbers<[1], [1], [0], [0], [0, 0, 1, 0], [], []>} : vector<8x8xbf16>, vector<8x8xbf16>, vector<8x8xf32> -> vector<8x8xf32>
      %159 = arith.addf %158, %110 : vector<8x8xf32>
      %cst_79 = arith.constant dense<0xFF800000> : vector<8xf32>
      %160 = vector.multi_reduction <maximumf>, %159, %cst_79 [1] : vector<8x8xf32> to vector<8xf32>
      %161 = vector.shape_cast %160 : vector<8xf32> to vector<8x1xf32>
      %162 = vector.broadcast %161 : vector<8x1xf32> to vector<8x8xf32>
      %163 = arith.subf %159, %162 : vector<8x8xf32>
      %164 = math.exp %163 : vector<8x8xf32>
      %cst_80 = arith.constant dense<0.000000e+00> : vector<8xf32>
      %165 = vector.multi_reduction <add>, %164, %cst_80 [1] : vector<8x8xf32> to vector<8xf32>
      %166 = vector.shape_cast %165 : vector<8xf32> to vector<8x1xf32>
      %167 = tpu.reciprocal %166 {approx = true} : vector<8x1xf32> -> vector<8x1xf32>
      %168 = vector.broadcast %167 : vector<8x1xf32> to vector<8x8xf32>
      %169 = arith.mulf %164, %168 : vector<8x8xf32>
      %170 = arith.truncf %169 : vector<8x8xf32> to vector<8x8xbf16>
      %171 = arith.index_cast %arg20 : i32 to index
      %c0_81 = arith.constant 0 : index
      %c0_82 = arith.constant 0 : index
      %172 = vector.load %arg19[%171, %c0_81, %c0_82] : memref<4x8x8xbf16, #tpu.memory_space<vmem>>, vector<1x8x8xbf16>
      %173 = vector.shape_cast %172 : vector<1x8x8xbf16> to vector<8x8xbf16>
      %cst_83 = arith.constant dense<0.000000e+00> : vector<8x8xf32>
      %174 = tpu.matmul %170, %173, %cst_83 {dimension_numbers = #tpu.dot_dimension_numbers<[1], [0], [0], [1], [0, 0, 1, 1], [], []>} : vector<8x8xbf16>, vector<8x8xbf16>, vector<8x8xf32> -> vector<8x8xf32>
      %175 = arith.truncf %174 : vector<8x8xf32> to vector<8x8xbf16>
      %176 = arith.index_cast %arg20 : i32 to index
      %c0_84 = arith.constant 0 : index
      %c0_85 = arith.constant 0 : index
      %177 = vector.load %arg5[%176, %c0_84, %c0_85] : memref<4x8x32xbf16, #tpu.memory_space<vmem>>, vector<1x8x32xbf16>
      %178 = vector.shape_cast %177 : vector<1x8x32xbf16> to vector<8x32xbf16>
      %cst_86 = arith.constant dense<0.000000e+00> : vector<8x32xf32>
      %179 = tpu.matmul %175, %178, %cst_86 {dimension_numbers = #tpu.dot_dimension_numbers<[1], [0], [0], [1], [0, 0, 1, 1], [], []>} : vector<8x8xbf16>, vector<8x32xbf16>, vector<8x32xf32> -> vector<8x32xf32>
      %180 = arith.addf %arg21, %179 : vector<8x32xf32>
      scf.yield %180 : vector<8x32xf32>
    }
    %c4_i32_53 = arith.constant 4 : i32
    %114 = arith.addf %1, %113 : vector<8x32xf32>
    %c0_54 = arith.constant 0 : index
    %c0_55 = arith.constant 0 : index
    %115 = vector.load %arg6[%c0_54, %c0_55] : memref<1x32xf32, #tpu.memory_space<vmem>>, vector<1x32xf32>
    %116 = vector.broadcast %115 : vector<1x32xf32> to vector<8x32xf32>
    %117 = arith.addf %114, %116 : vector<8x32xf32>
    %118 = arith.mulf %117, %117 : vector<8x32xf32>
    %cst_56 = arith.constant dense<0.000000e+00> : vector<8xf32>
    %119 = vector.multi_reduction <add>, %118, %cst_56 [1] : vector<8x32xf32> to vector<8xf32>
    %120 = vector.shape_cast %119 : vector<8xf32> to vector<8x1xf32>
    %121 = math.sqrt %120 : vector<8x1xf32>
    %cst_57 = arith.constant 9.99999997E-7 : f32
    %122 = vector.broadcast %cst_57 : f32 to vector<8x1xf32>
    %123 = arith.addf %121, %122 : vector<8x1xf32>
    %124 = tpu.reciprocal %123 {approx = true} : vector<8x1xf32> -> vector<8x1xf32>
    %125 = vector.broadcast %124 : vector<8x1xf32> to vector<8x32xf32>
    %126 = arith.mulf %117, %125 : vector<8x32xf32>
    %c0_58 = arith.constant 0 : index
    %c0_59 = arith.constant 0 : index
    %127 = vector.load %arg11[%c0_58, %c0_59] : memref<1x32xf32, #tpu.memory_space<vmem>>, vector<1x32xf32>
    %128 = vector.broadcast %127 : vector<1x32xf32> to vector<8x32xf32>
    %129 = arith.mulf %126, %128 : vector<8x32xf32>
    %130 = arith.truncf %129 : vector<8x32xf32> to vector<8x32xbf16>
    %c0_60 = arith.constant 0 : index
    %c0_61 = arith.constant 0 : index
    %131 = vector.load %arg12[%c0_60, %c0_61] : memref<32x64xbf16, #tpu.memory_space<vmem>>, vector<32x64xbf16>
    %cst_62 = arith.constant dense<0.000000e+00> : vector<8x64xf32>
    %132 = tpu.matmul %130, %131, %cst_62 {dimension_numbers = #tpu.dot_dimension_numbers<[1], [0], [0], [1], [0, 0, 1, 1], [], []>} : vector<8x32xbf16>, vector<32x64xbf16>, vector<8x64xf32> -> vector<8x64xf32>
    %c0_63 = arith.constant 0 : index
    %c0_64 = arith.constant 0 : index
    %133 = vector.load %arg13[%c0_63, %c0_64] : memref<1x64xf32, #tpu.memory_space<vmem>>, vector<1x64xf32>
    %134 = vector.broadcast %133 : vector<1x64xf32> to vector<8x64xf32>
    %135 = arith.addf %132, %134 : vector<8x64xf32>
    %136 = arith.negf %135 : vector<8x64xf32>
    %137 = math.exp %136 : vector<8x64xf32>
    %cst_65 = arith.constant 1.000000e+00 : f32
    %138 = vector.broadcast %cst_65 : f32 to vector<8x64xf32>
    %139 = arith.addf %138, %137 : vector<8x64xf32>
    %140 = arith.divf %138, %139 : vector<8x64xf32>
    %141 = arith.mulf %135, %140 : vector<8x64xf32>
    %142 = arith.truncf %141 : vector<8x64xf32> to vector<8x64xbf16>
    %c0_66 = arith.constant 0 : index
    %c0_67 = arith.constant 0 : index
    %143 = vector.load %arg14[%c0_66, %c0_67] : memref<64x32xbf16, #tpu.memory_space<vmem>>, vector<64x32xbf16>
    %cst_68 = arith.constant dense<0.000000e+00> : vector<8x32xf32>
    %144 = tpu.matmul %142, %143, %cst_68 {dimension_numbers = #tpu.dot_dimension_numbers<[1], [0], [0], [1], [0, 0, 1, 1], [], []>} : vector<8x64xbf16>, vector<64x32xbf16>, vector<8x32xf32> -> vector<8x32xf32>
    %c0_69 = arith.constant 0 : index
    %c0_70 = arith.constant 0 : index
    %145 = vector.load %arg15[%c0_69, %c0_70] : memref<1x32xf32, #tpu.memory_space<vmem>>, vector<1x32xf32>
    %146 = vector.broadcast %145 : vector<1x32xf32> to vector<8x32xf32>
    %147 = arith.addf %144, %146 : vector<8x32xf32>
    %148 = arith.addf %117, %147 : vector<8x32xf32>
    %c0_71 = arith.constant 0 : index
    %c0_72 = arith.constant 0 : index
    %c0_73 = arith.constant 0 : index
    %149 = vector.load %arg16[%c0_71, %c0_72, %c0_73] : memref<1x8x32xf32, #tpu.memory_space<vmem>>, vector<1x8x32xf32>
    %150 = vector.shape_cast %149 : vector<1x8x32xf32> to vector<8x32xf32>
    %151 = vector.shape_cast %148 : vector<8x32xf32> to vector<1x8x32xf32>
    tpu.vector_store %arg16[%c0_71, %c0_72, %c0_73], %151 {strides = array<i32>} : memref<1x8x32xf32, #tpu.memory_space<vmem>>, vector<1x8x32xf32>,
    return
  }
  func.func @transform_0(%arg0: i32) -> (i32, i32, i32) {
    %c0_i32 = arith.constant 0 : i32
    %c0_i32_0 = arith.constant 0 : i32
    %c0_i32_1 = arith.constant 0 : i32
    return %arg0, %c0_i32, %c0_i32_0 : i32, i32, i32
  }
  func.func @transform_1(%arg0: i32) -> (i32, i32) {
    %c0_i32 = arith.constant 0 : i32
    %c0_i32_0 = arith.constant 0 : i32
    %c0_i32_1 = arith.constant 0 : i32
    return %c0_i32, %c0_i32_0 : i32, i32
  }
  func.func @transform_2(%arg0: i32) -> (i32, i32) {
    %c0_i32 = arith.constant 0 : i32
    %c0_i32_0 = arith.constant 0 : i32
    %c0_i32_1 = arith.constant 0 : i32
    return %c0_i32, %c0_i32_0 : i32, i32
  }
  func.func @transform_3(%arg0: i32) -> (i32, i32) {
    %c0_i32 = arith.constant 0 : i32
    %c0_i32_0 = arith.constant 0 : i32
    %c0_i32_1 = arith.constant 0 : i32
    return %c0_i32, %c0_i32_0 : i32, i32
  }
  func.func @transform_4(%arg0: i32) -> (i32, i32, i32) {
    %c0_i32 = arith.constant 0 : i32
    %c0_i32_0 = arith.constant 0 : i32
    %c0_i32_1 = arith.constant 0 : i32
    %c0_i32_2 = arith.constant 0 : i32
    return %c0_i32, %c0_i32_0, %c0_i32_1 : i32, i32, i32
  }
  func.func @transform_5(%arg0: i32) -> (i32, i32) {
    %c0_i32 = arith.constant 0 : i32
    %c0_i32_0 = arith.constant 0 : i32
    %c0_i32_1 = arith.constant 0 : i32
    return %c0_i32, %c0_i32_0 : i32, i32
  }
  func.func @transform_6(%arg0: i32) -> (i32, i32) {
    %c0_i32 = arith.constant 0 : i32
    %c0_i32_0 = arith.constant 0 : i32
    %c0_i32_1 = arith.constant 0 : i32
    return %c0_i32, %c0_i32_0 : i32, i32
  }
  func.func @transform_7(%arg0: i32) -> (i32, i32) {
    %c0_i32 = arith.constant 0 : i32
    %c0_i32_0 = arith.constant 0 : i32
    %c0_i32_1 = arith.constant 0 : i32
    return %c0_i32, %c0_i32_0 : i32, i32
  }
  func.func @transform_8(%arg0: i32) -> (i32, i32) {
    %c0_i32 = arith.constant 0 : i32
    %c0_i32_0 = arith.constant 0 : i32
    %c0_i32_1 = arith.constant 0 : i32
    return %c0_i32, %c0_i32_0 : i32, i32
  }
  func.func @transform_9(%arg0: i32) -> (i32, i32) {
    %c0_i32 = arith.constant 0 : i32
    %c0_i32_0 = arith.constant 0 : i32
    %c0_i32_1 = arith.constant 0 : i32
    return %c0_i32, %c0_i32_0 : i32, i32
  }
  func.func @transform_10(%arg0: i32) -> (i32, i32) {
    %c0_i32 = arith.constant 0 : i32
    %c0_i32_0 = arith.constant 0 : i32
    %c0_i32_1 = arith.constant 0 : i32
    return %c0_i32, %c0_i32_0 : i32, i32
  }
  func.func @transform_11(%arg0: i32) -> (i32, i32) {
    %c0_i32 = arith.constant 0 : i32
    %c0_i32_0 = arith.constant 0 : i32
    %c0_i32_1 = arith.constant 0 : i32
    return %c0_i32, %c0_i32_0 : i32, i32
  }
  func.func @transform_12(%arg0: i32) -> (i32, i32) {
    %c0_i32 = arith.constant 0 : i32
    %c0_i32_0 = arith.constant 0 : i32
    %c0_i32_1 = arith.constant 0 : i32
    return %c0_i32, %c0_i32_0 : i32, i32
  }
  func.func @transform_13(%arg0: i32) -> (i32, i32) {
    %c0_i32 = arith.constant 0 : i32
    %c0_i32_0 = arith.constant 0 : i32
    %c0_i32_1 = arith.constant 0 : i32
    return %c0_i32, %c0_i32_0 : i32, i32
  }
  func.func @transform_14(%arg0: i32) -> (i32, i32) {
    %c0_i32 = arith.constant 0 : i32
    %c0_i32_0 = arith.constant 0 : i32
    %c0_i32_1 = arith.constant 0 : i32
    return %c0_i32, %c0_i32_0 : i32, i32
  }
  func.func @transform_15(%arg0: i32) -> (i32, i32, i32) {
    %c0_i32 = arith.constant 0 : i32
    %c0_i32_0 = arith.constant 0 : i32
    %c0_i32_1 = arith.constant 0 : i32
    return %arg0, %c0_i32, %c0_i32_0 : i32, i32, i32
  }
}

</mosaic_0001>

<llo_original>
// kernel: tpu_custom_call.1
$region0: #{tpu_custom_call.1}
  #allocation0 [shape = 'u32[]', space=smem, size = 0x4, offset = 0x4, fixed_abs, tag = 'smem constant byte address 0x4 - core index']
  #allocation1 [shape = 'u32[144,128]{1,0:T(1,128)}', space=vmem, size = 0x12000, scoped, tag = 'internal scratch']
  #allocation2 [shape = 'bf16[4,8,8]{2,1,0:T(8,128)(2,1)}', space=vmem, size = 0x2000, scoped, tag = 'scratch operand']
  #allocation3 [shape = 'bf16[4,8,8]{2,1,0:T(8,128)(2,1)}', space=vmem, size = 0x2000, scoped, tag = 'scratch operand']
  #allocation4 [shape = 'bf16[4,8,8]{2,1,0:T(8,128)(2,1)}', space=vmem, size = 0x2000, scoped, tag = 'scratch operand']
  %s0 = inlined_call_operand.hbm [shape: f32[2,8,32], index: 0, kind: input, shape index: {}]
  %s1 = inlined_call_operand.hbm [shape: f32[1,32], index: 1, kind: input, shape index: {}]
  %s2 = inlined_call_operand.hbm [shape: bf16[32,96], index: 2, kind: input, shape index: {}]
  %s3 = inlined_call_operand.hbm [shape: f32[1,96], index: 3, kind: input, shape index: {}]
  %s4 = inlined_call_operand.hbm [shape: bf16[4,8,32], index: 4, kind: input, shape index: {}]
  %s5 = inlined_call_operand.hbm [shape: f32[1,32], index: 5, kind: input, shape index: {}]
  %s6 = inlined_call_operand.hbm [shape: f32[8,32], index: 6, kind: input, shape index: {}]
  %s7 = inlined_call_operand.hbm [shape: f32[8,32], index: 7, kind: input, shape index: {}]
  %s8 = inlined_call_operand.hbm [shape: f32[8,32], index: 8, kind: input, shape index: {}]
  %s9 = inlined_call_operand.hbm [shape: f32[8,8], index: 9, kind: input, shape index: {}]
  %s10 = inlined_call_operand.hbm [shape: f32[1,32], index: 10, kind: input, shape index: {}]
  %s11 = inlined_call_operand.hbm [shape: bf16[32,64], index: 11, kind: input, shape index: {}]
  %s12 = inlined_call_operand.hbm [shape: f32[1,64], index: 12, kind: input, shape index: {}]
  %s13 = inlined_call_operand.hbm [shape: bf16[64,32], index: 13, kind: input, shape index: {}]
  %s14 = inlined_call_operand.hbm [shape: f32[1,32], index: 14, kind: input, shape index: {}]
  %s15 = inlined_call_operand.hbm [shape: f32[2,8,32], index: 15, kind: output, shape index: {}]
  %s16 = sld [smem:[#allocation0]]
  $region160: #{tpu_custom_call.1} parent=0
    _
  %s18 = ssub.s32 1, %s16
  %s19 = scalar_select 0, %s18, %s16
  $region1: #{tpu_custom_call.1} parent=0
    #allocation5 [shape = 'u8[8192]{0}', space=vmem, size = 0x2000, scoped, tag = 'input window, operand 0']
    #allocation6 [shape = 's32[2]{0}', space=sflag, size = 0x8, scoped, tag = 'scoped memory for tpu_custom_call.1']
    #allocation7 [shape = 's32[2]{0}', space=sflag, size = 0x8, scoped, tag = 'scoped memory for tpu_custom_call.1']
    #allocation8 [shape = 'u8[512]{0}', space=vmem, size = 0x400, scoped, tag = 'input window, operand 1, single buffered']
    #allocation9 [shape = 's32[1]{0}', space=sflag, size = 0x4, scoped, tag = 'scoped memory for tpu_custom_call.1']
    #allocation10 [shape = 'u8[8192]{0}', space=vmem, size = 0x2000, scoped, tag = 'input window, operand 2, single buffered']
    #allocation11 [shape = 'u8[512]{0}', space=vmem, size = 0x400, scoped, tag = 'input window, operand 3, single buffered']
    #allocation12 [shape = 's32[1]{0}', space=sflag, size = 0x4, scoped, tag = 'scoped memory for tpu_custom_call.1']
    #allocation13 [shape = 'u8[8192]{0}', space=vmem, size = 0x2000, scoped, tag = 'input window, operand 4, single buffered']
    #allocation14 [shape = 'u8[512]{0}', space=vmem, size = 0x400, scoped, tag = 'input window, operand 5, single buffered']
    #allocation15 [shape = 's32[1]{0}', space=sflag, size = 0x4, scoped, tag = 'scoped memory for tpu_custom_call.1']
    #allocation16 [shape = 'u8[4096]{0}', space=vmem, size = 0x1000, scoped, tag = 'input window, operand 6, single buffered']
    #allocation17 [shape = 'u8[4096]{0}', space=vmem, size = 0x1000, scoped, tag = 'input window, operand 7, single buffered']
    #allocation18 [shape = 's32[1]{0}', space=sflag, size = 0x4, scoped, tag = 'scoped memory for tpu_custom_call.1']
    #allocation19 [shape = 'u8[4096]{0}', space=vmem, size = 0x1000, scoped, tag = 'input window, operand 8, single buffered']
    #allocation20 [shape = 'u8[4096]{0}', space=vmem, size = 0x1000, scoped, tag = 'input window, operand 9, single buffered']
    #allocation21 [shape = 's32[1]{0}', space=sflag, size = 0x4, scoped, tag = 'scoped memory for tpu_custom_call.1']
    #allocation22 [shape = 'u8[512]{0}', space=vmem, size = 0x400, scoped, tag = 'input window, operand 10, single buffered']
    #allocation23 [shape = 'u8[8192]{0}', space=vmem, size = 0x2000, scoped, tag = 'input window, operand 11, single buffered']
    #allocation24 [shape = 's32[1]{0}', space=sflag, size = 0x4, scoped, tag = 'scoped memory for tpu_custom_call.1']
    #allocation25 [shape = 'u8[512]{0}', space=vmem, size = 0x400, scoped, tag = 'input window, operand 12, single buffered']
    #allocation26 [shape = 'u8[16384]{0}', space=vmem, size = 0x4000, scoped, tag = 'input window, operand 13, single buffered']
    #allocation27 [shape = 's32[1]{0}', space=sflag, size = 0x4, scoped, tag = 'scoped memory for tpu_custom_call.1']
    #allocation28 [shape = 'u8[512]{0}', space=vmem, size = 0x400, scoped, tag = 'input window, operand 14, single buffered']
    #allocation29 [shape = 'u8[8192]{0}', space=vmem, size = 0x2000, scoped, tag = 'output window, operand 0']
    %20 = vsyncpa [#allocation6], 0
    %s21 = scalar_lea.sflag [#allocation6], 1
    %22 = vsyncpa %s21, 0
    %23 = vsyncpa [#allocation9], 0
    %24 = vsyncpa [#allocation12], 0
    %25 = vsyncpa [#allocation15], 0
    %26 = vsyncpa [#allocation18], 0
    %27 = vsyncpa [#allocation21], 0
    %28 = vsyncpa [#allocation24], 0
    %29 = vsyncpa [#allocation27], 0
    %30 = vsyncpa [#allocation7], 0
    %s31 = scalar_lea.sflag [#allocation7], 1
    %32 = vsyncpa %s31, 0
    loop: start=0, step=1, limit=4
    $region2: #{tpu_custom_call.1} parent=1 // loop_pre_header
      _
    $region3: #{tpu_custom_call.1} parent=1 // loop_header
      %s34 = sphi 0, %s38
      %p35 = scmp.ge.s32.totalorder %s34, 4
      %s44 = sphi 0, %s46
      %s47 = sphi 0, %s44
      %s48 = sphi 0, %s47
      %s64 = sphi 0, %s48
      %s68 = sphi 0, %s68
      %s70 = sphi 0, %s68
      %s71 = sphi 0, %s70
      %s85 = sphi 0, %s71
      %s89 = sphi 0, %s89
      %s91 = sphi 0, %s89
      %s92 = sphi 0, %s91
      %s106 = sphi 0, %s92
      %s110 = sphi 0, %s110
      %s112 = sphi 0, %s110
      %s113 = sphi 0, %s112
      %s127 = sphi 0, %s113
      %s131 = sphi 0, %s131
      %s133 = sphi 0, %s131
      %s134 = sphi 0, %s133
      %s148 = sphi 0, %s134
      %s152 = sphi 0, %s152
      %s154 = sphi 0, %s152
      %s155 = sphi 0, %s154
      %s169 = sphi 0, %s155
      %s173 = sphi 0, %s173
      %s175 = sphi 0, %s173
      %s176 = sphi 0, %s175
      %s190 = sphi 0, %s176
      %s194 = sphi 0, %s194
      %s196 = sphi 0, %s194
      %s197 = sphi 0, %s196
      %s211 = sphi 0, %s197
      %s215 = sphi 0, %s215
      %s217 = sphi 0, %s215
      %s218 = sphi 0, %s217
      %s232 = sphi 0, %s218
      %s236 = sphi 0, %s236
      %s238 = sphi 0, %s236
      %s239 = sphi 0, %s238
      %s253 = sphi 0, %s239
      %s257 = sphi 0, %s257
      %s259 = sphi 0, %s257
      %s260 = sphi 0, %s259
      %s274 = sphi 0, %s260
      %s278 = sphi 0, %s278
      %s280 = sphi 0, %s278
      %s281 = sphi 0, %s280
      %s295 = sphi 0, %s281
      %s299 = sphi 0, %s299
      %s301 = sphi 0, %s299
      %s302 = sphi 0, %s301
      %s316 = sphi 0, %s302
      %s320 = sphi 0, %s320
      %s322 = sphi 0, %s320
      %s323 = sphi 0, %s322
      %s337 = sphi 0, %s323
      %s341 = sphi 0, %s341
      %s343 = sphi 0, %s341
      %s344 = sphi 0, %s343
      %s358 = sphi 0, %s344
      %s364 = sphi 0, %s366
      %s367 = sphi 0, %s364
      %s368 = sphi 0, %s367
      %s384 = sphi 0, %s368
    $region4: #{tpu_custom_call.1} parent=1 // loop_header_branch
      %37 = sbr.rel (%p35) target = $region8
    $region5: #{tpu_custom_call.1} parent=1 // loop_body
      %s39 = ssub.s32 %s34, 1
      %s40 = ssub.s32 %s34, 2
      %s41 = sadd.s32 %s34, 1
      %s42 = ssub.s32 %s34, %s41
      %p43 = scmp.eq.s32.totalorder %s42, 0
      %s45 = sadd.s32 %s44, 1
      %s46 = scalar_select %p43, %s44, %s45
      %p49 = pneg %p43
      %p50 = scmp.eq.s32.totalorder %s34, 1
      %p51 = por %p49, %p50
      %p52 = scmp.ne.s32.totalorder %s44, %s47
      %p53 = scmp.eq.s32.totalorder %s34, 0
      %p54 = por %p52, %p53
      %p55 = scmp.ne.s32.totalorder %s44, %s47
      %p56 = scmp.eq.s32.totalorder %s39, 1
      %p57 = por %p55, %p56
      %p58 = scmp.ne.s32.totalorder %s47, %s48
      %p59 = scmp.eq.s32.totalorder %s39, 0
      %p60 = por %p58, %p59
      %p61 = scmp.ne.s32.totalorder %s47, %s48
      %p62 = scmp.eq.s32.totalorder %s40, 1
      %p63 = por %p61, %p62
      %p65 = scmp.ne.s32.totalorder %s48, %s64
      %p66 = scmp.eq.s32.totalorder %s40, 0
      %p67 = por %p65, %p66
      %s69 = sadd.s32 %s68, 1
      %p72 = scmp.eq.s32.totalorder %s34, 1
      %p73 = scmp.ne.s32.totalorder %s68, %s70
      %p74 = scmp.eq.s32.totalorder %s34, 0
      %p75 = por %p73, %p74
      %p76 = scmp.ne.s32.totalorder %s68, %s70
      %p77 = scmp.eq.s32.totalorder %s39, 1
      %p78 = por %p76, %p77
      %p79 = scmp.ne.s32.totalorder %s70, %s71
      %p80 = scmp.eq.s32.totalorder %s39, 0
      %p81 = por %p79, %p80
      %p82 = scmp.ne.s32.totalorder %s70, %s71
      %p83 = scmp.eq.s32.totalorder %s40, 1
      %p84 = por %p82, %p83
      %p86 = scmp.ne.s32.totalorder %s71, %s85
      %p87 = scmp.eq.s32.totalorder %s40, 0
      %p88 = por %p86, %p87
      %s90 = sadd.s32 %s89, 1
      %p93 = scmp.eq.s32.totalorder %s34, 1
      %p94 = scmp.ne.s32.totalorder %s89, %s91
      %p95 = scmp.eq.s32.totalorder %s34, 0
      %p96 = por %p94, %p95
      %p97 = scmp.ne.s32.totalorder %s89, %s91
      %p98 = scmp.eq.s32.totalorder %s39, 1
      %p99 = por %p97, %p98
      %p100 = scmp.ne.s32.totalorder %s91, %s92
      %p101 = scmp.eq.s32.totalorder %s39, 0
      %p102 = por %p100, %p101
      %p103 = scmp.ne.s32.totalorder %s91, %s92
      %p104 = scmp.eq.s32.totalorder %s40, 1
      %p105 = por %p103, %p104
      %p107 = scmp.ne.s32.totalorder %s92, %s106
      %p108 = scmp.eq.s32.totalorder %s40, 0
      %p109 = por %p107, %p108
      %s111 = sadd.s32 %s110, 1
      %p114 = scmp.eq.s32.totalorder %s34, 1
      %p115 = scmp.ne.s32.totalorder %s110, %s112
      %p116 = scmp.eq.s32.totalorder %s34, 0
      %p117 = por %p115, %p116
      %p118 = scmp.ne.s32.totalorder %s110, %s112
      %p119 = scmp.eq.s32.totalorder %s39, 1
      %p120 = por %p118, %p119
      %p121 = scmp.ne.s32.totalorder %s112, %s113
      %p122 = scmp.eq.s32.totalorder %s39, 0
      %p123 = por %p121, %p122
      %p124 = scmp.ne.s32.totalorder %s112, %s113
      %p125 = scmp.eq.s32.totalorder %s40, 1
      %p126 = por %p124, %p125
      %p128 = scmp.ne.s32.totalorder %s113, %s127
      %p129 = scmp.eq.s32.totalorder %s40, 0
      %p130 = por %p128, %p129
      %s132 = sadd.s32 %s131, 1
      %p135 = scmp.eq.s32.totalorder %s34, 1
      %p136 = scmp.ne.s32.totalorder %s131, %s133
      %p137 = scmp.eq.s32.totalorder %s34, 0
      %p138 = por %p136, %p137
      %p139 = scmp.ne.s32.totalorder %s131, %s133
      %p140 = scmp.eq.s32.totalorder %s39, 1
      %p141 = por %p139, %p140
      %p142 = scmp.ne.s32.totalorder %s133, %s134
      %p143 = scmp.eq.s32.totalorder %s39, 0
      %p144 = por %p142, %p143
      %p145 = scmp.ne.s32.totalorder %s133, %s134
      %p146 = scmp.eq.s32.totalorder %s40, 1
      %p147 = por %p145, %p146
      %p149 = scmp.ne.s32.totalorder %s134, %s148
      %p150 = scmp.eq.s32.totalorder %s40, 0
      %p151 = por %p149, %p150
      %s153 = sadd.s32 %s152, 1
      %p156 = scmp.eq.s32.totalorder %s34, 1
      %p157 = scmp.ne.s32.totalorder %s152, %s154
      %p158 = scmp.eq.s32.totalorder %s34, 0
      %p159 = por %p157, %p158
      %p160 = scmp.ne.s32.totalorder %s152, %s154
      %p161 = scmp.eq.s32.totalorder %s39, 1
      %p162 = por %p160, %p161
      %p163 = scmp.ne.s32.totalorder %s154, %s155
      %p164 = scmp.eq.s32.totalorder %s39, 0
      %p165 = por %p163, %p164
      %p166 = scmp.ne.s32.totalorder %s154, %s155
      %p167 = scmp.eq.s32.totalorder %s40, 1
      %p168 = por %p166, %p167
      %p170 = scmp.ne.s32.totalorder %s155, %s169
      %p171 = scmp.eq.s32.totalorder %s40, 0
      %p172 = por %p170, %p171
      %s174 = sadd.s32 %s173, 1
      %p177 = scmp.eq.s32.totalorder %s34, 1
      %p178 = scmp.ne.s32.totalorder %s173, %s175
      %p179 = scmp.eq.s32.totalorder %s34, 0
      %p180 = por %p178, %p179
      %p181 = scmp.ne.s32.totalorder %s173, %s175
      %p182 = scmp.eq.s32.totalorder %s39, 1
      %p183 = por %p181, %p182
      %p184 = scmp.ne.s32.totalorder %s175, %s176
      %p185 = scmp.eq.s32.totalorder %s39, 0
      %p186 = por %p184, %p185
      %p187 = scmp.ne.s32.totalorder %s175, %s176
      %p188 = scmp.eq.s32.totalorder %s40, 1
      %p189 = por %p187, %p188
      %p191 = scmp.ne.s32.totalorder %s176, %s190
      %p192 = scmp.eq.s32.totalorder %s40, 0
      %p193 = por %p191, %p192
      %s195 = sadd.s32 %s194, 1
      %p198 = scmp.eq.s32.totalorder %s34, 1
      %p199 = scmp.ne.s32.totalorder %s194, %s196
      %p200 = scmp.eq.s32.totalorder %s34, 0
      %p201 = por %p199, %p200
      %p202 = scmp.ne.s32.totalorder %s194, %s196
      %p203 = scmp.eq.s32.totalorder %s39, 1
      %p204 = por %p202, %p203
      %p205 = scmp.ne.s32.totalorder %s196, %s197
      %p206 = scmp.eq.s32.totalorder %s39, 0
      %p207 = por %p205, %p206
      %p208 = scmp.ne.s32.totalorder %s196, %s197
      %p209 = scmp.eq.s32.totalorder %s40, 1
      %p210 = por %p208, %p209
      %p212 = scmp.ne.s32.totalorder %s197, %s211
      %p213 = scmp.eq.s32.totalorder %s40, 0
      %p214 = por %p212, %p213
      %s216 = sadd.s32 %s215, 1
      %p219 = scmp.eq.s32.totalorder %s34, 1
      %p220 = scmp.ne.s32.totalorder %s215, %s217
      %p221 = scmp.eq.s32.totalorder %s34, 0
      %p222 = por %p220, %p221
      %p223 = scmp.ne.s32.totalorder %s215, %s217
      %p224 = scmp.eq.s32.totalorder %s39, 1
      %p225 = por %p223, %p224
      %p226 = scmp.ne.s32.totalorder %s217, %s218
      %p227 = scmp.eq.s32.totalorder %s39, 0
      %p228 = por %p226, %p227
      %p229 = scmp.ne.s32.totalorder %s217, %s218
      %p230 = scmp.eq.s32.totalorder %s40, 1
      %p231 = por %p229, %p230
      %p233 = scmp.ne.s32.totalorder %s218, %s232
      %p234 = scmp.eq.s32.totalorder %s40, 0
      %p235 = por %p233, %p234
      %s237 = sadd.s32 %s236, 1
      %p240 = scmp.eq.s32.totalorder %s34, 1
      %p241 = scmp.ne.s32.totalorder %s236, %s238
      %p242 = scmp.eq.s32.totalorder %s34, 0
      %p243 = por %p241, %p242
      %p244 = scmp.ne.s32.totalorder %s236, %s238
      %p245 = scmp.eq.s32.totalorder %s39, 1
      %p246 = por %p244, %p245
      %p247 = scmp.ne.s32.totalorder %s238, %s239
      %p248 = scmp.eq.s32.totalorder %s39, 0
      %p249 = por %p247, %p248
      %p250 = scmp.ne.s32.totalorder %s238, %s239
      %p251 = scmp.eq.s32.totalorder %s40, 1
      %p252 = por %p250, %p251
      %p254 = scmp.ne.s32.totalorder %s239, %s253
      %p255 = scmp.eq.s32.totalorder %s40, 0
      %p256 = por %p254, %p255
      %s258 = sadd.s32 %s257, 1
      %p261 = scmp.eq.s32.totalorder %s34, 1
      %p262 = scmp.ne.s32.totalorder %s257, %s259
      %p263 = scmp.eq.s32.totalorder %s34, 0
      %p264 = por %p262, %p263
      %p265 = scmp.ne.s32.totalorder %s257, %s259
      %p266 = scmp.eq.s32.totalorder %s39, 1
      %p267 = por %p265, %p266
      %p268 = scmp.ne.s32.totalorder %s259, %s260
      %p269 = scmp.eq.s32.totalorder %s39, 0
      %p270 = por %p268, %p269
      %p271 = scmp.ne.s32.totalorder %s259, %s260
      %p272 = scmp.eq.s32.totalorder %s40, 1
      %p273 = por %p271, %p272
      %p275 = scmp.ne.s32.totalorder %s260, %s274
      %p276 = scmp.eq.s32.totalorder %s40, 0
      %p277 = por %p275, %p276
      %s279 = sadd.s32 %s278, 1
      %p282 = scmp.eq.s32.totalorder %s34, 1
      %p283 = scmp.ne.s32.totalorder %s278, %s280
      %p284 = scmp.eq.s32.totalorder %s34, 0
      %p285 = por %p283, %p284
      %p286 = scmp.ne.s32.totalorder %s278, %s280
      %p287 = scmp.eq.s32.totalorder %s39, 1
      %p288 = por %p286, %p287
      %p289 = scmp.ne.s32.totalorder %s280, %s281
      %p290 = scmp.eq.s32.totalorder %s39, 0
      %p291 = por %p289, %p290
      %p292 = scmp.ne.s32.totalorder %s280, %s281
      %p293 = scmp.eq.s32.totalorder %s40, 1
      %p294 = por %p292, %p293
      %p296 = scmp.ne.s32.totalorder %s281, %s295
      %p297 = scmp.eq.s32.totalorder %s40, 0
      %p298 = por %p296, %p297
      %s300 = sadd.s32 %s299, 1
      %p303 = scmp.eq.s32.totalorder %s34, 1
      %p304 = scmp.ne.s32.totalorder %s299, %s301
      %p305 = scmp.eq.s32.totalorder %s34, 0
      %p306 = por %p304, %p305
      %p307 = scmp.ne.s32.totalorder %s299, %s301
      %p308 = scmp.eq.s32.totalorder %s39, 1
      %p309 = por %p307, %p308
      %p310 = scmp.ne.s32.totalorder %s301, %s302
      %p311 = scmp.eq.s32.totalorder %s39, 0
      %p312 = por %p310, %p311
      %p313 = scmp.ne.s32.totalorder %s301, %s302
      %p314 = scmp.eq.s32.totalorder %s40, 1
      %p315 = por %p313, %p314
      %p317 = scmp.ne.s32.totalorder %s302, %s316
      %p318 = scmp.eq.s32.totalorder %s40, 0
      %p319 = por %p317, %p318
      %s321 = sadd.s32 %s320, 1
      %p324 = scmp.eq.s32.totalorder %s34, 1
      %p325 = scmp.ne.s32.totalorder %s320, %s322
      %p326 = scmp.eq.s32.totalorder %s34, 0
      %p327 = por %p325, %p326
      %p328 = scmp.ne.s32.totalorder %s320, %s322
      %p329 = scmp.eq.s32.totalorder %s39, 1
      %p330 = por %p328, %p329
      %p331 = scmp.ne.s32.totalorder %s322, %s323
      %p332 = scmp.eq.s32.totalorder %s39, 0
      %p333 = por %p331, %p332
      %p334 = scmp.ne.s32.totalorder %s322, %s323
      %p335 = scmp.eq.s32.totalorder %s40, 1
      %p336 = por %p334, %p335
      %p338 = scmp.ne.s32.totalorder %s323, %s337
      %p339 = scmp.eq.s32.totalorder %s40, 0
      %p340 = por %p338, %p339
      %s342 = sadd.s32 %s341, 1
      %p345 = scmp.eq.s32.totalorder %s34, 1
      %p346 = scmp.ne.s32.totalorder %s341, %s343
      %p347 = scmp.eq.s32.totalorder %s34, 0
      %p348 = por %p346, %p347
      %p349 = scmp.ne.s32.totalorder %s341, %s343
      %p350 = scmp.eq.s32.totalorder %s39, 1
      %p351 = por %p349, %p350
      %p352 = scmp.ne.s32.totalorder %s343, %s344
      %p353 = scmp.eq.s32.totalorder %s39, 0
      %p354 = por %p352, %p353
      %p355 = scmp.ne.s32.totalorder %s343, %s344
      %p356 = scmp.eq.s32.totalorder %s40, 1
      %p357 = por %p355, %p356
      %p359 = scmp.ne.s32.totalorder %s344, %s358
      %p360 = scmp.eq.s32.totalorder %s40, 0
      %p361 = por %p359, %p360
      %s362 = ssub.s32 %s34, %s41
      %p363 = scmp.eq.s32.totalorder %s362, 0
      %s365 = sadd.s32 %s364, 1
      %s366 = scalar_select %p363, %s364, %s365
      %p369 = pneg %p363
      %p370 = scmp.eq.s32.totalorder %s34, 1
      %p371 = por %p369, %p370
      %p372 = scmp.ne.s32.totalorder %s364, %s367
      %p373 = scmp.eq.s32.totalorder %s34, 0
      %p374 = por %p372, %p373
      %p375 = scmp.ne.s32.totalorder %s364, %s367
      %p376 = scmp.eq.s32.totalorder %s39, 1
      %p377 = por %p375, %p376
      %p378 = scmp.ne.s32.totalorder %s367, %s368
      %p379 = scmp.eq.s32.totalorder %s39, 0
      %p380 = por %p378, %p379
      %p381 = scmp.ne.s32.totalorder %s367, %s368
      %p382 = scmp.eq.s32.totalorder %s40, 1
      %p383 = por %p381, %p382
      %p385 = scmp.ne.s32.totalorder %s368, %s384
      %p386 = scmp.eq.s32.totalorder %s40, 0
      %p387 = por %p385, %p386
      %p388 = scmp.le.s32.totalorder 1, %s34
      %p389 = scmp.lt.s32.totalorder %s34, 3
      %p390 = pnand %p388, %p389
      %p391 = pneg %p390
      // Predicated region
      $region9: #{tpu_custom_call.1} parent=5 // pred_check
        _
      $region10: #{tpu_custom_call.1} parent=5 // pred_check_branch
        %393 = sbr.rel (%p390) target = $region12
      $region11: #{tpu_custom_call.1} parent=5 // pred_region
        %s394 = ssub.s32 %s34, 1
        // Predicated region
        $region13: #{tpu_custom_call.1} parent=11 // pred_check
          %p395 = pneg %p81
        $region14: #{tpu_custom_call.1} parent=11 // pred_check_branch
          %397 = sbr.rel (%p395) target = $region16
        $region15: #{tpu_custom_call.1} parent=11 // pred_region
          %s399 = ssub.s32 16, 16
          %400 = vsyncadd [#allocation9], %s399
          %s402 = sshll.u32 [#allocation8], 4
          %s403 = int_to_ptr.vmem [resolvable:$true] %s402
          %405 = dma.hbm_to_vmem [thread:$0]  %s1, 16, %s403, [#allocation9]
        $region16: #{tpu_custom_call.1} parent=11 // pred_fallthru
          _
        // Predicated region
        $region17: #{tpu_custom_call.1} parent=11 // pred_check
          %p406 = pneg %p102
        $region18: #{tpu_custom_call.1} parent=11 // pred_check_branch
          %408 = sbr.rel (%p406) target = $region20
        $region19: #{tpu_custom_call.1} parent=11 // pred_region
          %s410 = ssub.s32 256, 256
          %411 = vsyncadd [#allocation9], %s410
          %s412 = sshll.u32 [#allocation10], 4
          %s413 = int_to_ptr.vmem [resolvable:$true] %s412
          %418 = dma.hbm_to_vmem [thread:$0]  %s2, 256, %s413, [#allocation9], 64, 64, 4
        $region20: #{tpu_custom_call.1} parent=11 // pred_fallthru
          _
        // Predicated region
        $region21: #{tpu_custom_call.1} parent=11 // pred_check
          %p419 = pneg %p123
        $region22: #{tpu_custom_call.1} parent=11 // pred_check_branch
          %421 = sbr.rel (%p419) target = $region24
        $region23: #{tpu_custom_call.1} parent=11 // pred_region
          %s423 = ssub.s32 16, 16
          %424 = vsyncadd [#allocation12], %s423
          %s426 = sshll.u32 [#allocation11], 4
          %s427 = int_to_ptr.vmem [resolvable:$true] %s426
          %429 = dma.hbm_to_vmem [thread:$0]  %s3, 16, %s427, [#allocation12]
        $region24: #{tpu_custom_call.1} parent=11 // pred_fallthru
          _
        // Predicated region
        $region25: #{tpu_custom_call.1} parent=11 // pred_check
          %p430 = pneg %p144
        $region26: #{tpu_custom_call.1} parent=11 // pred_check_branch
          %432 = sbr.rel (%p430) target = $region28
        $region27: #{tpu_custom_call.1} parent=11 // pred_region
          %s434 = ssub.s32 256, 256
          %435 = vsyncadd [#allocation12], %s434
          %s436 = sshll.u32 [#allocation13], 4
          %s437 = int_to_ptr.vmem [resolvable:$true] %s436
          %442 = dma.hbm_to_vmem [thread:$0]  %s4, 256, %s437, [#allocation12], 64, 64, 4
        $region28: #{tpu_custom_call.1} parent=11 // pred_fallthru
          _
        // Predicated region
        $region29: #{tpu_custom_call.1} parent=11 // pred_check
          %p443 = pneg %p165
        $region30: #{tpu_custom_call.1} parent=11 // pred_check_branch
          %445 = sbr.rel (%p443) target = $region32
        $region31: #{tpu_custom_call.1} parent=11 // pred_region
          %s447 = ssub.s32 16, 16
          %448 = vsyncadd [#allocation15], %s447
          %s450 = sshll.u32 [#allocation14], 4
          %s451 = int_to_ptr.vmem [resolvable:$true] %s450
          %453 = dma.hbm_to_vmem [thread:$0]  %s5, 16, %s451, [#allocation15]
        $region32: #{tpu_custom_call.1} parent=11 // pred_fallthru
          _
        // Predicated region
        $region33: #{tpu_custom_call.1} parent=11 // pred_check
          %p454 = pneg %p186
        $region34: #{tpu_custom_call.1} parent=11 // pred_check_branch
          %456 = sbr.rel (%p454) target = $region36
        $region35: #{tpu_custom_call.1} parent=11 // pred_region
          %s458 = ssub.s32 128, 128
          %459 = vsyncadd [#allocation15], %s458
          %s461 = sshll.u32 [#allocation16], 4
          %s462 = int_to_ptr.vmem [resolvable:$true] %s461
          %464 = dma.hbm_to_vmem [thread:$0]  %s6, 128, %s462, [#allocation15]
        $region36: #{tpu_custom_call.1} parent=11 // pred_fallthru
          _
        // Predicated region
        $region37: #{tpu_custom_call.1} parent=11 // pred_check
          %p465 = pneg %p207
        $region38: #{tpu_custom_call.1} parent=11 // pred_check_branch
          %467 = sbr.rel (%p465) target = $region40
        $region39: #{tpu_custom_call.1} parent=11 // pred_region
          %s469 = ssub.s32 128, 128
          %470 = vsyncadd [#allocation18], %s469
          %s472 = sshll.u32 [#allocation17], 4
          %s473 = int_to_ptr.vmem [resolvable:$true] %s472
          %475 = dma.hbm_to_vmem [thread:$0]  %s7, 128, %s473, [#allocation18]
        $region40: #{tpu_custom_call.1} parent=11 // pred_fallthru
          _
        // Predicated region
        $region41: #{tpu_custom_call.1} parent=11 // pred_check
          %p476 = pneg %p228
        $region42: #{tpu_custom_call.1} parent=11 // pred_check_branch
          %478 = sbr.rel (%p476) target = $region44
        $region43: #{tpu_custom_call.1} parent=11 // pred_region
          %s480 = ssub.s32 128, 128
          %481 = vsyncadd [#allocation18], %s480
          %s483 = sshll.u32 [#allocation19], 4
          %s484 = int_to_ptr.vmem [resolvable:$true] %s483
          %486 = dma.hbm_to_vmem [thread:$0]  %s8, 128, %s484, [#allocation18]
        $region44: #{tpu_custom_call.1} parent=11 // pred_fallthru
          _
        // Predicated region
        $region45: #{tpu_custom_call.1} parent=11 // pred_check
          %p487 = pneg %p249
        $region46: #{tpu_custom_call.1} parent=11 // pred_check_branch
          %489 = sbr.rel (%p487) target = $region48
        $region47: #{tpu_custom_call.1} parent=11 // pred_region
          %s491 = ssub.s32 128, 128
          %492 = vsyncadd [#allocation21], %s491
          %s494 = sshll.u32 [#allocation20], 4
          %s495 = int_to_ptr.vmem [resolvable:$true] %s494
          %497 = dma.hbm_to_vmem [thread:$0]  %s9, 128, %s495, [#allocation21]
        $region48: #{tpu_custom_call.1} parent=11 // pred_fallthru
          _
        // Predicated region
        $region49: #{tpu_custom_call.1} parent=11 // pred_check
          %p498 = pneg %p270
        $region50: #{tpu_custom_call.1} parent=11 // pred_check_branch
          %500 = sbr.rel (%p498) target = $region52
        $region51: #{tpu_custom_call.1} parent=11 // pred_region
          %s502 = ssub.s32 16, 16
          %503 = vsyncadd [#allocation21], %s502
          %s505 = sshll.u32 [#allocation22], 4
          %s506 = int_to_ptr.vmem [resolvable:$true] %s505
          %508 = dma.hbm_to_vmem [thread:$0]  %s10, 16, %s506, [#allocation21]
        $region52: #{tpu_custom_call.1} parent=11 // pred_fallthru
          _
        // Predicated region
        $region53: #{tpu_custom_call.1} parent=11 // pred_check
          %p509 = pneg %p291
        $region54: #{tpu_custom_call.1} parent=11 // pred_check_branch
          %511 = sbr.rel (%p509) target = $region56
        $region55: #{tpu_custom_call.1} parent=11 // pred_region
          %s513 = ssub.s32 256, 256
          %514 = vsyncadd [#allocation24], %s513
          %s515 = sshll.u32 [#allocation23], 4
          %s516 = int_to_ptr.vmem [resolvable:$true] %s515
          %521 = dma.hbm_to_vmem [thread:$0]  %s11, 256, %s516, [#allocation24], 64, 64, 4
        $region56: #{tpu_custom_call.1} parent=11 // pred_fallthru
          _
        // Predicated region
        $region57: #{tpu_custom_call.1} parent=11 // pred_check
          %p522 = pneg %p312
        $region58: #{tpu_custom_call.1} parent=11 // pred_check_branch
          %524 = sbr.rel (%p522) target = $region60
        $region59: #{tpu_custom_call.1} parent=11 // pred_region
          %s526 = ssub.s32 16, 16
          %527 = vsyncadd [#allocation24], %s526
          %s529 = sshll.u32 [#allocation25], 4
          %s530 = int_to_ptr.vmem [resolvable:$true] %s529
          %532 = dma.hbm_to_vmem [thread:$0]  %s12, 16, %s530, [#allocation24]
        $region60: #{tpu_custom_call.1} parent=11 // pred_fallthru
          _
        // Predicated region
        $region61: #{tpu_custom_call.1} parent=11 // pred_check
          %p533 = pneg %p333
        $region62: #{tpu_custom_call.1} parent=11 // pred_check_branch
          %535 = sbr.rel (%p533) target = $region64
        $region63: #{tpu_custom_call.1} parent=11 // pred_region
          %s537 = ssub.s32 512, 512
          %538 = vsyncadd [#allocation27], %s537
          %s539 = sshll.u32 [#allocation26], 4
          %s540 = int_to_ptr.vmem [resolvable:$true] %s539
          %545 = dma.hbm_to_vmem [thread:$0]  %s13, 512, %s540, [#allocation27], 64, 64, 4
        $region64: #{tpu_custom_call.1} parent=11 // pred_fallthru
          _
        // Predicated region
        $region65: #{tpu_custom_call.1} parent=11 // pred_check
          %p546 = pneg %p354
        $region66: #{tpu_custom_call.1} parent=11 // pred_check_branch
          %548 = sbr.rel (%p546) target = $region68
        $region67: #{tpu_custom_call.1} parent=11 // pred_region
          %s550 = ssub.s32 16, 16
          %551 = vsyncadd [#allocation27], %s550
          %s553 = sshll.u32 [#allocation28], 4
          %s554 = int_to_ptr.vmem [resolvable:$true] %s553
          %556 = dma.hbm_to_vmem [thread:$0]  %s14, 16, %s554, [#allocation27]
        $region68: #{tpu_custom_call.1} parent=11 // pred_fallthru
          _
      $region12: #{tpu_custom_call.1} parent=5 // pred_fallthru
        _
      %p557 = scmp.lt.s32.totalorder %s34, 2
      // Predicated region
      $region69: #{tpu_custom_call.1} parent=5 // pred_check
        %p558 = pneg %p557
      $region70: #{tpu_custom_call.1} parent=5 // pred_check_branch
        %560 = sbr.rel (%p558) target = $region72
      $region71: #{tpu_custom_call.1} parent=5 // pred_region
        // Predicated region
        $region73: #{tpu_custom_call.1} parent=71 // pred_check
          %p561 = pneg %p54
        $region74: #{tpu_custom_call.1} parent=71 // pred_check_branch
          %563 = sbr.rel (%p561) target = $region76
        $region75: #{tpu_custom_call.1} parent=71 // pred_region
          %s564 = sand.u32 %s44, 1
          %s565 = scalar_lea.sflag [#allocation6], %s564
          %s566 = sand.u32 %s44, 1
          %s567 = smul.addr %s566, 8
          %s568 = scalar_lea.vmem [#allocation5], %s567
          %s570 = ssub.s32 128, 128
          %571 = vsyncadd %s565, %s570
          %s572 = smul.addr %s34, 128
          %s573 = scalar_lea.hbm %s0, %s572
          %s575 = sshll.u32 %s568, 4
          %s576 = int_to_ptr.vmem [resolvable:$true] %s575
          %578 = dma.hbm_to_vmem [thread:$0]  %s573, 128, %s576, %s565
        $region76: #{tpu_custom_call.1} parent=71 // pred_fallthru
          _
      $region72: #{tpu_custom_call.1} parent=5 // pred_fallthru
        _
      %p579 = scmp.le.s32.totalorder 1, %s34
      %p580 = scmp.lt.s32.totalorder %s34, 3
      %p581 = pnand %p579, %p580
      %p582 = pneg %p581
      // Predicated region
      $region77: #{tpu_custom_call.1} parent=5 // pred_check
        _
      $region78: #{tpu_custom_call.1} parent=5 // pred_check_branch
        %584 = sbr.rel (%p581) target = $region80
      $region79: #{tpu_custom_call.1} parent=5 // pred_region
        %s585 = ssub.s32 %s34, 1
        %s586 = sand.u32 %s47, 1
        %s587 = scalar_lea.sflag [#allocation6], %s586
        %s588 = sand.u32 %s47, 1
        %s589 = smul.addr %s588, 8
        %s590 = scalar_lea.vmem [#allocation5], %s589
        // Predicated region
        $region81: #{tpu_custom_call.1} parent=79 // pred_check
          %p591 = pneg %p60
        $region82: #{tpu_custom_call.1} parent=79 // pred_check_branch
          %593 = sbr.rel (%p591) target = $region84
        $region83: #{tpu_custom_call.1} parent=79 // pred_region
          %594 = dma.done %s587, 128
        $region84: #{tpu_custom_call.1} parent=79 // pred_fallthru
          _
        // Predicated region
        $region85: #{tpu_custom_call.1} parent=79 // pred_check
          %p595 = pneg %p81
        $region86: #{tpu_custom_call.1} parent=79 // pred_check_branch
          %597 = sbr.rel (%p595) target = $region88
        $region87: #{tpu_custom_call.1} parent=79 // pred_region
          %598 = dma.done [#allocation9], 16
        $region88: #{tpu_custom_call.1} parent=79 // pred_fallthru
          _
        // Predicated region
        $region89: #{tpu_custom_call.1} parent=79 // pred_check
          %p599 = pneg %p102
        $region90: #{tpu_custom_call.1} parent=79 // pred_check_branch
          %601 = sbr.rel (%p599) target = $region92
        $region91: #{tpu_custom_call.1} parent=79 // pred_region
          %602 = dma.done [#allocation9], 256
        $region92: #{tpu_custom_call.1} parent=79 // pred_fallthru
          _
        // Predicated region
        $region93: #{tpu_custom_call.1} parent=79 // pred_check
          %p603 = pneg %p123
        $region94: #{tpu_custom_call.1} parent=79 // pred_check_branch
          %605 = sbr.rel (%p603) target = $region96
        $region95: #{tpu_custom_call.1} parent=79 // pred_region
          %606 = dma.done [#allocation12], 16
        $region96: #{tpu_custom_call.1} parent=79 // pred_fallthru
          _
        // Predicated region
        $region97: #{tpu_custom_call.1} parent=79 // pred_check
          %p607 = pneg %p144
        $region98: #{tpu_custom_call.1} parent=79 // pred_check_branch
          %609 = sbr.rel (%p607) target = $region100
        $region99: #{tpu_custom_call.1} parent=79 // pred_region
          %610 = dma.done [#allocation12], 256
        $region100: #{tpu_custom_call.1} parent=79 // pred_fallthru
          _
        // Predicated region
        $region101: #{tpu_custom_call.1} parent=79 // pred_check
          %p611 = pneg %p165
        $region102: #{tpu_custom_call.1} parent=79 // pred_check_branch
          %613 = sbr.rel (%p611) target = $region104
        $region103: #{tpu_custom_call.1} parent=79 // pred_region
          %614 = dma.done [#allocation15], 16
        $region104: #{tpu_custom_call.1} parent=79 // pred_fallthru
          _
        // Predicated region
        $region105: #{tpu_custom_call.1} parent=79 // pred_check
          %p615 = pneg %p186
        $region106: #{tpu_custom_call.1} parent=79 // pred_check_branch
          %617 = sbr.rel (%p615) target = $region108
        $region107: #{tpu_custom_call.1} parent=79 // pred_region
          %618 = dma.done [#allocation15], 128
        $region108: #{tpu_custom_call.1} parent=79 // pred_fallthru
          _
        // Predicated region
        $region109: #{tpu_custom_call.1} parent=79 // pred_check
          %p619 = pneg %p207
        $region110: #{tpu_custom_call.1} parent=79 // pred_check_branch
          %621 = sbr.rel (%p619) target = $region112
        $region111: #{tpu_custom_call.1} parent=79 // pred_region
          %622 = dma.done [#allocation18], 128
        $region112: #{tpu_custom_call.1} parent=79 // pred_fallthru
          _
        // Predicated region
        $region113: #{tpu_custom_call.1} parent=79 // pred_check
          %p623 = pneg %p228
        $region114: #{tpu_custom_call.1} parent=79 // pred_check_branch
          %625 = sbr.rel (%p623) target = $region116
        $region115: #{tpu_custom_call.1} parent=79 // pred_region
          %626 = dma.done [#allocation18], 128
        $region116: #{tpu_custom_call.1} parent=79 // pred_fallthru
          _
        // Predicated region
        $region117: #{tpu_custom_call.1} parent=79 // pred_check
          %p627 = pneg %p249
        $region118: #{tpu_custom_call.1} parent=79 // pred_check_branch
          %629 = sbr.rel (%p627) target = $region120
        $region119: #{tpu_custom_call.1} parent=79 // pred_region
          %630 = dma.done [#allocation21], 128
        $region120: #{tpu_custom_call.1} parent=79 // pred_fallthru
          _
        // Predicated region
        $region121: #{tpu_custom_call.1} parent=79 // pred_check
          %p631 = pneg %p270
        $region122: #{tpu_custom_call.1} parent=79 // pred_check_branch
          %633 = sbr.rel (%p631) target = $region124
        $region123: #{tpu_custom_call.1} parent=79 // pred_region
          %634 = dma.done [#allocation21], 16
        $region124: #{tpu_custom_call.1} parent=79 // pred_fallthru
          _
        // Predicated region
        $region125: #{tpu_custom_call.1} parent=79 // pred_check
          %p635 = pneg %p291
        $region126: #{tpu_custom_call.1} parent=79 // pred_check_branch
          %637 = sbr.rel (%p635) target = $region128
        $region127: #{tpu_custom_call.1} parent=79 // pred_region
          %638 = dma.done [#allocation24], 256
        $region128: #{tpu_custom_call.1} parent=79 // pred_fallthru
          _
        // Predicated region
        $region129: #{tpu_custom_call.1} parent=79 // pred_check
          %p639 = pneg %p312
        $region130: #{tpu_custom_call.1} parent=79 // pred_check_branch
          %641 = sbr.rel (%p639) target = $region132
        $region131: #{tpu_custom_call.1} parent=79 // pred_region
          %642 = dma.done [#allocation24], 16
        $region132: #{tpu_custom_call.1} parent=79 // pred_fallthru
          _
        // Predicated region
        $region133: #{tpu_custom_call.1} parent=79 // pred_check
          %p643 = pneg %p333
        $region134: #{tpu_custom_call.1} parent=79 // pred_check_branch
          %645 = sbr.rel (%p643) target = $region136
        $region135: #{tpu_custom_call.1} parent=79 // pred_region
          %646 = dma.done [#allocation27], 512
        $region136: #{tpu_custom_call.1} parent=79 // pred_fallthru
          _
        // Predicated region
        $region137: #{tpu_custom_call.1} parent=79 // pred_check
          %p647 = pneg %p354
        $region138: #{tpu_custom_call.1} parent=79 // pred_check_branch
          %649 = sbr.rel (%p647) target = $region140
        $region139: #{tpu_custom_call.1} parent=79 // pred_region
          %650 = dma.done [#allocation27], 16
        $region140: #{tpu_custom_call.1} parent=79 // pred_fallthru
          _
        %s651 = sand.u32 %s47, 1
        %s652 = scalar_lea.sflag [#allocation6], %s651
        %s653 = sand.u32 %s47, 1
        %s654 = smul.addr %s653, 8
        %s655 = scalar_lea.vmem [#allocation5], %s654
        %p656 = pneg %p60
        %p657 = pneg %p57
        %p658 = pneg %p81
        %p659 = pneg %p78
        %p660 = pneg %p102
        %p661 = pneg %p99
        %p662 = pneg %p123
        %p663 = pneg %p120
        %p664 = pneg %p144
        %p665 = pneg %p141
        %p666 = pneg %p165
        %p667 = pneg %p162
        %p668 = pneg %p186
        %p669 = pneg %p183
        %p670 = pneg %p207
        %p671 = pneg %p204
        %p672 = pneg %p228
        %p673 = pneg %p225
        %p674 = pneg %p249
        %p675 = pneg %p246
        %p676 = pneg %p270
        %p677 = pneg %p267
        %p678 = pneg %p291
        %p679 = pneg %p288
        %p680 = pneg %p312
        %p681 = pneg %p309
        %p682 = pneg %p333
        %p683 = pneg %p330
        %p684 = pneg %p354
        %p685 = pneg %p351
        %p686 = pneg %p380
        %p687 = pneg %p377
        %s688 = sand.u32 %s367, 1
        %s689 = scalar_lea.sflag [#allocation7], %s688
        %s690 = sand.u32 %s367, 1
        %s691 = smul.addr %s690, 8
        %s692 = scalar_lea.vmem [#allocation29], %s691
        %v694 = vld [vmem:[%s590] sm:$0xff]
        %v695 = vmul.f32 %v694, %v694
        %vm696 = vcmask 261120
        %v697 = vsel %vm696, %v695, 0.0
        %698 = vadd.xlane.f32.xlu0 %v697
        %v699 = vpop.xlane.xlu0 %698
        %v700 = vrsqrt.pop %v699
        %v701 = vmul.f32 %v699, %v700
        %vm702 = vcmp.eq.f32.partialorder %v699, inf
        %v703 = vsel %vm702, %v699, %v701
        %vm704 = vcmp.eq.f32.partialorder %v699, 0.0
        %v705 = vand.u32 %v699, 2147483648
        %v706 = vsel %vm704, %v705, %v703
        %v707 = vadd.f32 %v706, 1e-06
        %v708 = vrcp.pop %v707
        %v709 = vmul.f32 %v694, %v708
        %v710 = vld [vmem:[#allocation8] sm:$0x1]
        %v712 = vlaneseq
        %v713 = vshrl.u32 %v712, 7
        %v714 = vsub.s32 0, %v713
        %v715 = vrot.slane %v710, %v714
        %v717 = vmul.f32 %v709, %v715
        %v718 = vpack.c.bf16 %v717, %v717
        %v719 = vld [vmem:[#allocation10] sm:$0xf]
        %v720 = vld [vmem:[#allocation10 + $0x4] sm:$0xf]
        %v721 = vld [vmem:[#allocation10 + $0x8] sm:$0xf]
        %v722 = vld [vmem:[#allocation10 + $0xc] sm:$0xf]
        %v723 = vld [vmem:[#allocation11] sm:$0x1]
        %v725 = vlaneseq
        %v726 = vshrl.u32 %v725, 7
        %v727 = vsub.s32 0, %v726
        %v728 = vrot.slane %v723, %v727
        %v734 = vunpack.c.l.b16 %v719
        %v735 = vunpack.c.l.b16 %v720
        %v736 = vunpack.c.l.b16 %v721
        %v737 = vunpack.c.l.b16 %v722
        %v738 = vpack.c.b16 %v735, %v734
        %v739 = vpack.c.b16 %v737, %v736
        %v743 = vsel %vm696, %v718, 0
        %745 = vmatprep.subr.bf16.mxu0 0
        %746 = vmatpush1.bf16.msra.mxu0 %v738
        %747 = vmatprep.subr.bf16.mxu0 0
        %748 = vmatpush1.bf16.msra.mxu0 %v739
        %749 = vmatprep.subr.bf16.mxu0 0
        %750 = vmatpush1.bf16.msra.mxu0 0
        %751 = vmatprep.subr.bf16.mxu0 0
        %752 = vmatpush1.bf16.msra.mxu0 0
        %753 = vmatprep.subr.bf16.mxu0 0
        %754 = vmatpush1.bf16.msra.mxu0 0
        %755 = vmatprep.subr.bf16.mxu0 0
        %756 = vmatpush1.bf16.msra.mxu0 0
        %757 = vmatprep.subr.bf16.mxu0 0
        %758 = vmatpush1.bf16.msra.mxu0 0
        %759 = vmatprep.subr.bf16.mxu0 0
        %760 = vmatpush1.bf16.msra.mxu0 0
        %761 = vmatprep.subr.bf16.mxu0 0
        %762 = vmatpush1.bf16.msra.mxu0 0
        %763 = vmatprep.subr.bf16.mxu0 0
        %764 = vmatpush1.bf16.msra.mxu0 0
        %765 = vmatprep.subr.bf16.mxu0 0
        %766 = vmatpush1.bf16.msra.mxu0 0
        %767 = vmatprep.subr.bf16.mxu0 0
        %768 = vmatpush1.bf16.msra.mxu0 0
        %769 = vmatprep.subr.bf16.mxu0 0
        %770 = vmatpush1.bf16.msra.mxu0 0
        %771 = vmatprep.subr.bf16.mxu0 0
        %772 = vmatpush1.bf16.msra.mxu0 0
        %773 = vmatprep.subr.bf16.mxu0 0
        %774 = vmatpush1.bf16.msra.mxu0 0
        %775 = vmatprep.subr.bf16.mxu0 0
        %776 = vmatpush1.bf16.msra.mxu0 0
        %777 = vmatprep.mubr.bf16.mxu0 0
        %778 = vmatmul.mubr.bf16.gmra.mrb[0].mxu0 %v743
        %v779 = vpop.f32.mrb[0].mxu0
        %v780 = vadd.f32 %v728, %v779
        %v781 = vpop.f32.mrb[0].mxu0
        %v782 = vpop.f32.mrb[0].mxu0
        %v783 = vpop.f32.mrb[0].mxu0
        %784 = vdwg.mxu0
        %v785 = vld [vmem:[#allocation16] sm:$0xff]
        %v786 = vld [vmem:[#allocation17] sm:$0xff]
        %v787 = vld [vmem:[#allocation19] sm:$0xff]
        %789 = vrot.lane.b32.xlu0 %v780, 97
        %v790 = vpop.permute.xlu0 %789
        %792 = vrot.lane.b32.xlu0 %v780, 1
        %v793 = vpop.permute.xlu0 %792
        %vm795 = vcmask 7168
        %v796 = vsel %vm795, %v790, %v793
        %797 = vrot.lane.b32.xlu0 %v780, 127
        %v798 = vpop.permute.xlu0 %797
        %800 = vrot.lane.b32.xlu0 %v780, 31
        %v801 = vpop.permute.xlu0 %800
        %vm803 = vcmask 252928
        %v804 = vsel %vm803, %v798, %v801
        %v805 = vmul.f32 %v780, %v785
        %v806 = vmul.f32 %v796, %v786
        %v807 = vadd.f32 %v805, %v806
        %v808 = vmul.f32 %v804, %v787
        %v809 = vadd.f32 %v807, %v808
        %v810 = vmul.f32 %v809, 0.35355338
        %811 = vrot.lane.b32.xlu0 %v780, 65
        %v812 = vpop.permute.xlu0 %811
        %v814 = vsel %vm795, %v812, %v790
        %815 = vrot.lane.b32.xlu0 %v780, 95
        %v816 = vpop.permute.xlu0 %815
        %v818 = vsel %vm803, %v816, %v798
        %820 = vrot.lane.b32.xlu0 %v785, 32
        %v821 = vpop.permute.xlu0 %820
        %v823 = vmul.f32 %v780, %v821
        %v824 = vmul.f32 %v814, %v786
        %826 = vrot.lane.b32.xlu0 %v824, 32
        %v827 = vpop.permute.xlu0 %826
        %v829 = vadd.f32 %v823, %v827
        %v830 = vmul.f32 %v818, %v787
        %832 = vrot.lane.b32.xlu0 %v830, 32
        %v833 = vpop.permute.xlu0 %832
        %v835 = vadd.f32 %v829, %v833
        %v836 = vpack.c.bf16 %v810, %v810
        %vm837 = vcmask 60416
        %838 = vst.msk [vmem:[#allocation2] sm:$0xf] %vm837, %v836
        %v839 = vpack.c.bf16 %v835, %v835
        %v841 = vunpack.c.l.b16 %v839
        %v842 = vpack.c.b16 %v841, %v841
        %843 = vrot.lane.b32.xlu0 %v842, 96
        %v844 = vpop.permute.xlu0 %843
        %846 = vst.msk [vmem:[#allocation3] sm:$0xf] %vm837, %v844
        %v847 = vpack.c.bf16 %v780, %v780
        %v849 = vunpack.c.l.b16 %v847
        %v850 = vpack.c.b16 %v849, %v849
        %851 = vrot.lane.b32.xlu0 %v850, 64
        %v852 = vpop.permute.xlu0 %851
        %854 = vst.msk [vmem:[#allocation4] sm:$0xf] %vm837, %v852
        %v856 = vunpack.c.l.b16 %v836
        %v857 = vpack.c.b16 %v856, %v856
        %858 = vrot.lane.b32.xlu0 %v857, 120
        %v859 = vpop.permute.xlu0 %858
        %s861 = scalar_lea.vmem [#allocation2], 4
        %862 = vst.msk [vmem:[%s861] sm:$0xf] %vm837, %v859
        %863 = vrot.lane.b32.xlu0 %v842, 88
        %v864 = vpop.permute.xlu0 %863
        %s866 = scalar_lea.vmem [#allocation3], 4
        %867 = vst.msk [vmem:[%s866] sm:$0xf] %vm837, %v864
        %868 = vrot.lane.b32.xlu0 %v850, 56
        %v869 = vpop.permute.xlu0 %868
        %s871 = scalar_lea.vmem [#allocation4], 4
        %872 = vst.msk [vmem:[%s871] sm:$0xf] %vm837, %v869
        %873 = vrot.lane.b32.xlu0 %v857, 112
        %v874 = vpop.permute.xlu0 %873
        %s876 = scalar_lea.vmem [#allocation2], 8
        %877 = vst.msk [vmem:[%s876] sm:$0xf] %vm837, %v874
        %878 = vrot.lane.b32.xlu0 %v842, 80
        %v879 = vpop.permute.xlu0 %878
        %s881 = scalar_lea.vmem [#allocation3], 8
        %882 = vst.msk [vmem:[%s881] sm:$0xf] %vm837, %v879
        %883 = vrot.lane.b32.xlu0 %v850, 48
        %v884 = vpop.permute.xlu0 %883
        %s886 = scalar_lea.vmem [#allocation4], 8
        %887 = vst.msk [vmem:[%s886] sm:$0xf] %vm837, %v884
        %888 = vrot.lane.b32.xlu0 %v857, 104
        %v889 = vpop.permute.xlu0 %888
        %s891 = scalar_lea.vmem [#allocation2], 12
        %892 = vst.msk [vmem:[%s891] sm:$0xf] %vm837, %v889
        %893 = vrot.lane.b32.xlu0 %v842, 72
        %v894 = vpop.permute.xlu0 %893
        %s896 = scalar_lea.vmem [#allocation3], 12
        %897 = vst.msk [vmem:[%s896] sm:$0xf] %vm837, %v894
        %898 = vrot.lane.b32.xlu0 %v850, 40
        %v899 = vpop.permute.xlu0 %898
        %s901 = scalar_lea.vmem [#allocation4], 12
        %902 = vst.msk [vmem:[%s901] sm:$0xf] %vm837, %v899
        %v903 = vld [vmem:[#allocation20] sm:$0xff]
        loop: start=0, step=1, limit=4
        $region141: #{tpu_custom_call.1} parent=79 // loop_pre_header
          _
        $region142: #{tpu_custom_call.1} parent=79 // loop_header
          %s905 = sphi 0, %s909
          %p906 = scmp.ge.s32.totalorder %s905, 4
          %v910 = vphi 0.0, %v1076
        $region143: #{tpu_custom_call.1} parent=79 // loop_header_branch
          %908 = sbr.rel (%p906) target = $region147
        $region144: #{tpu_custom_call.1} parent=79 // loop_body
          %s911 = smul.addr %s905, 4
          %s912 = scalar_lea.vmem [#allocation2], %s911
          %v913 = vld [vmem:[%s912] sm:$0xf]
          %s914 = smul.addr %s905, 4
          %s915 = scalar_lea.vmem [#allocation3], %s914
          %v916 = vld [vmem:[%s915] sm:$0xf]
          %vm917 = vcmask 64512
          %v919 = vsel %vm917, %v913, 0
          %v922 = vsel %vm917, %v916, 0
          %924 = vmatprep.subr.bf16.mxu0 0
          %925 = vmatpush1.bf16.xpose.msra.mxu0 %v922
          %926 = vmatprep.subr.bf16.mxu0 0
          %927 = vmatpush1.bf16.xpose.msra.mxu0 0
          %928 = vmatprep.subr.bf16.mxu0 0
          %929 = vmatpush1.bf16.xpose.msra.mxu0 0
          %930 = vmatprep.subr.bf16.mxu0 0
          %931 = vmatpush1.bf16.xpose.msra.mxu0 0
          %932 = vmatprep.subr.bf16.mxu0 0
          %933 = vmatpush1.bf16.xpose.msra.mxu0 0
          %934 = vmatprep.subr.bf16.mxu0 0
          %935 = vmatpush1.bf16.xpose.msra.mxu0 0
          %936 = vmatprep.subr.bf16.mxu0 0
          %937 = vmatpush1.bf16.xpose.msra.mxu0 0
          %938 = vmatprep.subr.bf16.mxu0 0
          %939 = vmatpush1.bf16.xpose.msra.mxu0 0
          %940 = vmatprep.subr.bf16.mxu0 0
          %941 = vmatpush1.bf16.xpose.msra.mxu0 0
          %942 = vmatprep.subr.bf16.mxu0 0
          %943 = vmatpush1.bf16.xpose.msra.mxu0 0
          %944 = vmatprep.subr.bf16.mxu0 0
          %945 = vmatpush1.bf16.xpose.msra.mxu0 0
          %946 = vmatprep.subr.bf16.mxu0 0
          %947 = vmatpush1.bf16.xpose.msra.mxu0 0
          %948 = vmatprep.subr.bf16.mxu0 0
          %949 = vmatpush1.bf16.xpose.msra.mxu0 0
          %950 = vmatprep.subr.bf16.mxu0 0
          %951 = vmatpush1.bf16.xpose.msra.mxu0 0
          %952 = vmatprep.subr.bf16.mxu0 0
          %953 = vmatpush1.bf16.xpose.msra.mxu0 0
          %954 = vmatprep.subr.bf16.mxu0 0
          %955 = vmatpush1.bf16.xpose.msra.mxu0 0
          %956 = vmatprep.mubr.bf16.mxu0 0
          %957 = vmatmul.mubr.bf16.gmra.mrb[0].mxu0 %v919
          %v958 = vpop.f32.mrb[0].mxu0
          %v959 = vadd.f32 %v903, %v958
          %v960 = vpop.f32.mrb[0].mxu0
          %v961 = vpop.f32.mrb[0].mxu0
          %v962 = vpop.f32.mrb[0].mxu0
          %963 = vdwg.mxu0
          %v964 = vsel %vm917, %v959, -inf
          %965 = vmax.xlane.f32.xlu0 %v964
          %v966 = vpop.xlane.xlu0 %965
          %v967 = vsub.f32 %v959, %v966
          %v968 = vmul.f32 %v967, 1.442695
          %v969 = vpow.pop %v968
          %v970 = vsel %vm917, %v969, 0.0
          %971 = vadd.xlane.f32.xlu0 %v970
          %v972 = vpop.xlane.xlu0 %971
          %v973 = vrcp.pop %v972
          %v974 = vmul.f32 %v969, %v973
          %v975 = vpack.c.bf16 %v974, %v974
          %s976 = smul.addr %s905, 4
          %s977 = scalar_lea.vmem [#allocation4], %s976
          %v978 = vld [vmem:[%s977] sm:$0xf]
          %v980 = vsel %vm917, %v975, 0
          %vm982 = vcmask 1043456
          %v984 = vsel %vm982, %v978, 0
          %986 = vmatprep.subr.bf16.mxu0 0
          %987 = vmatpush1.bf16.msra.mxu0 %v984
          %988 = vmatprep.subr.bf16.mxu0 0
          %989 = vmatpush1.bf16.msra.mxu0 0
          %990 = vmatprep.subr.bf16.mxu0 0
          %991 = vmatpush1.bf16.msra.mxu0 0
          %992 = vmatprep.subr.bf16.mxu0 0
          %993 = vmatpush1.bf16.msra.mxu0 0
          %994 = vmatprep.subr.bf16.mxu0 0
          %995 = vmatpush1.bf16.msra.mxu0 0
          %996 = vmatprep.subr.bf16.mxu0 0
          %997 = vmatpush1.bf16.msra.mxu0 0
          %998 = vmatprep.subr.bf16.mxu0 0
          %999 = vmatpush1.bf16.msra.mxu0 0
          %1000 = vmatprep.subr.bf16.mxu0 0
          %1001 = vmatpush1.bf16.msra.mxu0 0
          %1002 = vmatprep.subr.bf16.mxu0 0
          %1003 = vmatpush1.bf16.msra.mxu0 0
          %1004 = vmatprep.subr.bf16.mxu0 0
          %1005 = vmatpush1.bf16.msra.mxu0 0
          %1006 = vmatprep.subr.bf16.mxu0 0
          %1007 = vmatpush1.bf16.msra.mxu0 0
          %1008 = vmatprep.subr.bf16.mxu0 0
          %1009 = vmatpush1.bf16.msra.mxu0 0
          %1010 = vmatprep.subr.bf16.mxu0 0
          %1011 = vmatpush1.bf16.msra.mxu0 0
          %1012 = vmatprep.subr.bf16.mxu0 0
          %1013 = vmatpush1.bf16.msra.mxu0 0
          %1014 = vmatprep.subr.bf16.mxu0 0
          %1015 = vmatpush1.bf16.msra.mxu0 0
          %1016 = vmatprep.subr.bf16.mxu0 0
          %1017 = vmatpush1.bf16.msra.mxu0 0
          %1018 = vmatprep.mubr.bf16.mxu0 0
          %1019 = vmatmul.mubr.bf16.gmra.mrb[0].mxu0 %v980
          %v1020 = vpop.f32.mrb[0].mxu0
          %v1021 = vadd.f32 0.0, %v1020
          %v1022 = vpop.f32.mrb[0].mxu0
          %v1023 = vpop.f32.mrb[0].mxu0
          %v1024 = vpop.f32.mrb[0].mxu0
          %1025 = vdwg.mxu0
          %v1026 = vpack.c.bf16 %v1021, %v1021
          %s1027 = smul.addr %s905, 4
          %s1028 = scalar_lea.vmem [#allocation13], %s1027
          %v1029 = vld [vmem:[%s1028] sm:$0xf]
          %v1031 = vsel %vm917, %v1026, 0
          %v1034 = vsel %vm982, %v1029, 0
          %1036 = vmatprep.subr.bf16.mxu0 0
          %1037 = vmatpush1.bf16.msra.mxu0 %v1034
          %1038 = vmatprep.subr.bf16.mxu0 0
          %1039 = vmatpush1.bf16.msra.mxu0 0
          %1040 = vmatprep.subr.bf16.mxu0 0
          %1041 = vmatpush1.bf16.msra.mxu0 0
          %1042 = vmatprep.subr.bf16.mxu0 0
          %1043 = vmatpush1.bf16.msra.mxu0 0
          %1044 = vmatprep.subr.bf16.mxu0 0
          %1045 = vmatpush1.bf16.msra.mxu0 0
          %1046 = vmatprep.subr.bf16.mxu0 0
          %1047 = vmatpush1.bf16.msra.mxu0 0
          %1048 = vmatprep.subr.bf16.mxu0 0
          %1049 = vmatpush1.bf16.msra.mxu0 0
          %1050 = vmatprep.subr.bf16.mxu0 0
          %1051 = vmatpush1.bf16.msra.mxu0 0
          %1052 = vmatprep.subr.bf16.mxu0 0
          %1053 = vmatpush1.bf16.msra.mxu0 0
          %1054 = vmatprep.subr.bf16.mxu0 0
          %1055 = vmatpush1.bf16.msra.mxu0 0
          %1056 = vmatprep.subr.bf16.mxu0 0
          %1057 = vmatpush1.bf16.msra.mxu0 0
          %1058 = vmatprep.subr.bf16.mxu0 0
          %1059 = vmatpush1.bf16.msra.mxu0 0
          %1060 = vmatprep.subr.bf16.mxu0 0
          %1061 = vmatpush1.bf16.msra.mxu0 0
          %1062 = vmatprep.subr.bf16.mxu0 0
          %1063 = vmatpush1.bf16.msra.mxu0 0
          %1064 = vmatprep.subr.bf16.mxu0 0
          %1065 = vmatpush1.bf16.msra.mxu0 0
          %1066 = vmatprep.subr.bf16.mxu0 0
          %1067 = vmatpush1.bf16.msra.mxu0 0
          %1068 = vmatprep.mubr.bf16.mxu0 0
          %1069 = vmatmul.mubr.bf16.gmra.mrb[0].mxu0 %v1031
          %v1070 = vpop.f32.mrb[0].mxu0
          %v1071 = vadd.f32 0.0, %v1070
          %v1072 = vpop.f32.mrb[0].mxu0
          %v1073 = vpop.f32.mrb[0].mxu0
          %v1074 = vpop.f32.mrb[0].mxu0
          %1075 = vdwg.mxu0
          %v1076 = vadd.f32 %v910, %v1071
        $region145: #{tpu_custom_call.1} parent=79 // loop_footer
          %s909 = sadd.s32 1, %s905
        $region146: #{tpu_custom_call.1} parent=79 // loop_footer_branch
          %904 = sbr.rel target = $region142
        $region147: #{tpu_custom_call.1} parent=79 // loop_exit
          _
        %v1077 = vadd.f32 %v694, %v910
        %v1078 = vld [vmem:[#allocation14] sm:$0x1]
        %v1080 = vlaneseq
        %v1081 = vshrl.u32 %v1080, 7
        %v1082 = vsub.s32 0, %v1081
        %v1083 = vrot.slane %v1078, %v1082
        %v1085 = vadd.f32 %v1077, %v1083
        %v1086 = vmul.f32 %v1085, %v1085
        %v1087 = vsel %vm696, %v1086, 0.0
        %1088 = vadd.xlane.f32.xlu0 %v1087
        %v1089 = vpop.xlane.xlu0 %1088
        %v1090 = vrsqrt.pop %v1089
        %v1091 = vmul.f32 %v1089, %v1090
        %vm1092 = vcmp.eq.f32.partialorder %v1089, inf
        %v1093 = vsel %vm1092, %v1089, %v1091
        %vm1094 = vcmp.eq.f32.partialorder %v1089, 0.0
        %v1095 = vand.u32 %v1089, 2147483648
        %v1096 = vsel %vm1094, %v1095, %v1093
        %v1097 = vadd.f32 %v1096, 1e-06
        %v1098 = vrcp.pop %v1097
        %v1099 = vmul.f32 %v1085, %v1098
        %v1100 = vld [vmem:[#allocation22] sm:$0x1]
        %v1102 = vlaneseq
        %v1103 = vshrl.u32 %v1102, 7
        %v1104 = vsub.s32 0, %v1103
        %v1105 = vrot.slane %v1100, %v1104
        %v1107 = vmul.f32 %v1099, %v1105
        %v1108 = vpack.c.bf16 %v1107, %v1107
        %v1109 = vld [vmem:[#allocation23] sm:$0xf]
        %v1110 = vld [vmem:[#allocation23 + $0x4] sm:$0xf]
        %v1111 = vld [vmem:[#allocation23 + $0x8] sm:$0xf]
        %v1112 = vld [vmem:[#allocation23 + $0xc] sm:$0xf]
        %v1113 = vld [vmem:[#allocation25] sm:$0x1]
        %v1115 = vlaneseq
        %v1116 = vshrl.u32 %v1115, 7
        %v1117 = vsub.s32 0, %v1116
        %v1118 = vrot.slane %v1113, %v1117
        %v1124 = vunpack.c.l.b16 %v1109
        %v1125 = vunpack.c.l.b16 %v1110
        %v1126 = vunpack.c.l.b16 %v1111
        %v1127 = vunpack.c.l.b16 %v1112
        %v1128 = vpack.c.b16 %v1125, %v1124
        %v1129 = vpack.c.b16 %v1127, %v1126
        %v1133 = vsel %vm696, %v1108, 0
        %1135 = vmatprep.subr.bf16.mxu0 0
        %1136 = vmatpush1.bf16.msra.mxu0 %v1128
        %1137 = vmatprep.subr.bf16.mxu0 0
        %1138 = vmatpush1.bf16.msra.mxu0 %v1129
        %1139 = vmatprep.subr.bf16.mxu0 0
        %1140 = vmatpush1.bf16.msra.mxu0 0
        %1141 = vmatprep.subr.bf16.mxu0 0
        %1142 = vmatpush1.bf16.msra.mxu0 0
        %1143 = vmatprep.subr.bf16.mxu0 0
        %1144 = vmatpush1.bf16.msra.mxu0 0
        %1145 = vmatprep.subr.bf16.mxu0 0
        %1146 = vmatpush1.bf16.msra.mxu0 0
        %1147 = vmatprep.subr.bf16.mxu0 0
        %1148 = vmatpush1.bf16.msra.mxu0 0
        %1149 = vmatprep.subr.bf16.mxu0 0
        %1150 = vmatpush1.bf16.msra.mxu0 0
        %1151 = vmatprep.subr.bf16.mxu0 0
        %1152 = vmatpush1.bf16.msra.mxu0 0
        %1153 = vmatprep.subr.bf16.mxu0 0
        %1154 = vmatpush1.bf16.msra.mxu0 0
        %1155 = vmatprep.subr.bf16.mxu0 0
        %1156 = vmatpush1.bf16.msra.mxu0 0
        %1157 = vmatprep.subr.bf16.mxu0 0
        %1158 = vmatpush1.bf16.msra.mxu0 0
        %1159 = vmatprep.subr.bf16.mxu0 0
        %1160 = vmatpush1.bf16.msra.mxu0 0
        %1161 = vmatprep.subr.bf16.mxu0 0
        %1162 = vmatpush1.bf16.msra.mxu0 0
        %1163 = vmatprep.subr.bf16.mxu0 0
        %1164 = vmatpush1.bf16.msra.mxu0 0
        %1165 = vmatprep.subr.bf16.mxu0 0
        %1166 = vmatpush1.bf16.msra.mxu0 0
        %1167 = vmatprep.mubr.bf16.mxu0 0
        %1168 = vmatmul.mubr.bf16.gmra.mrb[0].mxu0 %v1133
        %v1169 = vpop.f32.mrb[0].mxu0
        %v1170 = vadd.f32 %v1118, %v1169
        %v1171 = vpop.f32.mrb[0].mxu0
        %v1172 = vpop.f32.mrb[0].mxu0
        %v1173 = vpop.f32.mrb[0].mxu0
        %1174 = vdwg.mxu0
        %v1175 = vxor.u32 %v1170, 2147483648
        %v1176 = vmul.f32 %v1175, 1.442695
        %v1177 = vpow.pop %v1176
        %v1178 = vadd.f32 %v1177, 1.0
        %v1179 = vrcp.pop %v1178
        %v1180 = vmul.f32 1.0, %v1179
        %v1181 = vmul.f32 %v1170, %v1180
        %v1182 = vpack.c.bf16 %v1181, %v1181
        %v1183 = vld [vmem:[#allocation26] sm:$0xf]
        %v1184 = vld [vmem:[#allocation26 + $0x4] sm:$0xf]
        %v1185 = vld [vmem:[#allocation26 + $0x8] sm:$0xf]
        %v1186 = vld [vmem:[#allocation26 + $0xc] sm:$0xf]
        %v1187 = vld [vmem:[#allocation26 + $0x10] sm:$0xf]
        %v1188 = vld [vmem:[#allocation26 + $0x14] sm:$0xf]
        %v1189 = vld [vmem:[#allocation26 + $0x18] sm:$0xf]
        %v1190 = vld [vmem:[#allocation26 + $0x1c] sm:$0xf]
        %v1191 = vld [vmem:[#allocation28] sm:$0x1]
        %v1193 = vlaneseq
        %v1194 = vshrl.u32 %v1193, 7
        %v1195 = vsub.s32 0, %v1194
        %v1196 = vrot.slane %v1191, %v1195
        %v1206 = vunpack.c.l.b16 %v1183
        %v1207 = vunpack.c.l.b16 %v1184
        %v1208 = vunpack.c.l.b16 %v1185
        %v1209 = vunpack.c.l.b16 %v1186
        %v1210 = vunpack.c.l.b16 %v1187
        %v1211 = vunpack.c.l.b16 %v1188
        %v1212 = vunpack.c.l.b16 %v1189
        %v1213 = vunpack.c.l.b16 %v1190
        %v1214 = vpack.c.b16 %v1207, %v1206
        %v1215 = vpack.c.b16 %v1209, %v1208
        %v1216 = vpack.c.b16 %v1211, %v1210
        %v1217 = vpack.c.b16 %v1213, %v1212
        %vm1222 = vcmask 523264
        %v1224 = vsel %vm1222, %v1182, 0
        %1226 = vmatprep.subr.bf16.mxu0 0
        %1227 = vmatpush1.bf16.msra.mxu0 %v1214
        %1228 = vmatprep.subr.bf16.mxu0 0
        %1229 = vmatpush1.bf16.msra.mxu0 %v1215
        %1230 = vmatprep.subr.bf16.mxu0 0
        %1231 = vmatpush1.bf16.msra.mxu0 %v1216
        %1232 = vmatprep.subr.bf16.mxu0 0
        %1233 = vmatpush1.bf16.msra.mxu0 %v1217
        %1234 = vmatprep.subr.bf16.mxu0 0
        %1235 = vmatpush1.bf16.msra.mxu0 0
        %1236 = vmatprep.subr.bf16.mxu0 0
        %1237 = vmatpush1.bf16.msra.mxu0 0
        %1238 = vmatprep.subr.bf16.mxu0 0
        %1239 = vmatpush1.bf16.msra.mxu0 0
        %1240 = vmatprep.subr.bf16.mxu0 0
        %1241 = vmatpush1.bf16.msra.mxu0 0
        %1242 = vmatprep.subr.bf16.mxu0 0
        %1243 = vmatpush1.bf16.msra.mxu0 0
        %1244 = vmatprep.subr.bf16.mxu0 0
        %1245 = vmatpush1.bf16.msra.mxu0 0
        %1246 = vmatprep.subr.bf16.mxu0 0
        %1247 = vmatpush1.bf16.msra.mxu0 0
        %1248 = vmatprep.subr.bf16.mxu0 0
        %1249 = vmatpush1.bf16.msra.mxu0 0
        %1250 = vmatprep.subr.bf16.mxu0 0
        %1251 = vmatpush1.bf16.msra.mxu0 0
        %1252 = vmatprep.subr.bf16.mxu0 0
        %1253 = vmatpush1.bf16.msra.mxu0 0
        %1254 = vmatprep.subr.bf16.mxu0 0
        %1255 = vmatpush1.bf16.msra.mxu0 0
        %1256 = vmatprep.subr.bf16.mxu0 0
        %1257 = vmatpush1.bf16.msra.mxu0 0
        %1258 = vmatprep.mubr.bf16.mxu0 0
        %1259 = vmatmul.mubr.bf16.gmra.mrb[0].mxu0 %v1224
        %v1260 = vpop.f32.mrb[0].mxu0
        %v1261 = vadd.f32 %v1196, %v1260
        %v1262 = vpop.f32.mrb[0].mxu0
        %v1263 = vpop.f32.mrb[0].mxu0
        %v1264 = vpop.f32.mrb[0].mxu0
        %1265 = vdwg.mxu0
        %v1266 = vadd.f32 %v1085, %v1261
        %1267 = vst.msk [vmem:[%s692] sm:$0xff] %vm696, %v1266
        %s1268 = sand.u32 %s367, 1
        %s1269 = scalar_lea.sflag [#allocation7], %s1268
        %s1270 = sand.u32 %s367, 1
        %s1271 = smul.addr %s1270, 8
        %s1272 = scalar_lea.vmem [#allocation29], %s1271
        // Predicated region
        $region148: #{tpu_custom_call.1} parent=79 // pred_check
          %p1273 = pneg %p377
        $region149: #{tpu_custom_call.1} parent=79 // pred_check_branch
          %1275 = sbr.rel (%p1273) target = $region151
        $region150: #{tpu_custom_call.1} parent=79 // pred_region
          %s1277 = ssub.s32 128, 128
          %1278 = vsyncadd %s1269, %s1277
          %s1279 = smul.addr %s39, 128
          %s1280 = scalar_lea.hbm %s15, %s1279
          %s1282 = sshll.u32 %s1272, 4
          %s1283 = int_to_ptr.vmem [resolvable:$true] %s1282
          %1285 = dma.vmem_to_hbm [thread:$0]  %s1283, 128, %s1280, %s1269
        $region151: #{tpu_custom_call.1} parent=79 // pred_fallthru
          _
      $region80: #{tpu_custom_call.1} parent=5 // pred_fallthru
        _
      %p1286 = scmp.le.s32.totalorder 2, %s34
      // Predicated region
      $region152: #{tpu_custom_call.1} parent=5 // pred_check
        %p1287 = pneg %p1286
      $region153: #{tpu_custom_call.1} parent=5 // pred_check_branch
        %1289 = sbr.rel (%p1287) target = $region155
      $region154: #{tpu_custom_call.1} parent=5 // pred_region
        %s1290 = ssub.s32 %s34, 2
        // Predicated region
        $region156: #{tpu_custom_call.1} parent=154 // pred_check
          %p1291 = pneg %p383
        $region157: #{tpu_custom_call.1} parent=154 // pred_check_branch
          %1293 = sbr.rel (%p1291) target = $region159
        $region158: #{tpu_custom_call.1} parent=154 // pred_region
          %s1294 = sand.u32 %s368, 1
          %s1295 = scalar_lea.sflag [#allocation7], %s1294
          %s1296 = sand.u32 %s368, 1
          %s1297 = smul.addr %s1296, 8
          %s1298 = scalar_lea.vmem [#allocation29], %s1297
          %1299 = dma.done %s1295, 128
        $region159: #{tpu_custom_call.1} parent=154 // pred_fallthru
          _
      $region155: #{tpu_custom_call.1} parent=5 // pred_fallthru
        _
    $region6: #{tpu_custom_call.1} parent=1 // loop_footer
      %s38 = sadd.s32 1, %s34
    $region7: #{tpu_custom_call.1} parent=1 // loop_footer_branch
      %33 = sbr.rel target = $region3
    $region8: #{tpu_custom_call.1} parent=1 // loop_exit
      _
    %1300 = vsyncpa [#allocation6], 1
    %s1301 = scalar_lea.sflag [#allocation6], 1
    %1302 = vsyncpa %s1301, 1
    %1303 = vsyncpa [#allocation9], 1
    %1304 = vsyncpa [#allocation12], 1
    %1305 = vsyncpa [#allocation15], 1
    %1306 = vsyncpa [#allocation18], 1
    %1307 = vsyncpa [#allocation21], 1
    %1308 = vsyncpa [#allocation24], 1
    %1309 = vsyncpa [#allocation27], 1
    %1310 = vsyncpa [#allocation7], 1
    %s1311 = scalar_lea.sflag [#allocation7], 1
    %1312 = vsyncpa %s1311, 1

</llo_original>
